<compile_context>
chip_gen: v5e
topology: v5e:2x2
jax: 0.10.0
libtpu: 0.0.40
codegen_flags: <defaults>
</compile_context>

<pallas_src>
import functools

import jax
import jax.numpy as jnp
from jax.experimental import pallas as pl
from jax.experimental.pallas import tpu as pltpu


def _round_up(x, m):
    return (x + m - 1) // m * m


def _pick_block_cols(n_cols, max_cols=2048):
    """Lane-block width over the flattened batch*H*W axis.

    Wide blocks (>=512 lanes) keep the MXU fed and amortize per-step pipeline
    overhead; the cap keeps double-buffered blocks comfortably inside scoped
    VMEM (v7x: 64 MiB physical).  Small problems get a single grid step.
    NOTE(v7x): when n_cols > max_cols this yields >=2 blocks on the "parallel"
    grid axis so both TensorCores get work.
    """
    assert n_cols % 128 == 0, "batch*H*W must be a multiple of 128"
    bc = min(n_cols, max_cols)
    while n_cols % bc:
        bc -= 128
    return bc


def _default_gate_dtype():
    """bf16 gate math on v6e/v7x (bf16 VPU/EUP), f32 on v5e (no bf16 VPU/EUP)."""
    try:
        kind = jax.devices()[0].device_kind.lower()
    except Exception:
        return jnp.float32
    if "v5 lite" in kind or "v5e" in kind or "v5lite" in kind:
        return jnp.float32
    return jnp.bfloat16


# ----------------------------------------------------------------------------
# Pallas kernel: one wide lane-block of flattened (batch, h, w) columns.
# ----------------------------------------------------------------------------
def convlstm_kernel(patch_ref, w_ref, b_ref, c_ref, wci_ref, wcf_ref, wco_ref,
                    ch_ref, cc_ref, *, hidden_channels, gate_dtype):
    """Shapes seen per grid step (cols = lane-block of batch*H*W positions):

    patch_ref : (Kdim_pad, cols)  bf16  im2col patches, (channel, ky, kx)-major
    w_ref     : (4*Ch, Kdim_pad)  bf16  fused x/h conv weight, gate order i,f,g,o
    b_ref     : (4*Ch, 1)         f32   bias (the x-convs carry the bias)
    c_ref, wci_ref, wcf_ref, wco_ref : (Ch, cols) f32
    ch_ref    : (Ch, cols)        f32 or bf16
    cc_ref    : (Ch, cols)        f32
    """
    Ch = hidden_channels
    f32 = jnp.float32
    act = lambda v: v.astype(gate_dtype)      # no-op when gate_dtype == f32

    # Fused conv: all K*K taps, both convs (x & h) and all four gates in one
    # MXU matmul with f32 accumulation.
    acc = jnp.dot(w_ref[...], patch_ref[...], preferred_element_type=f32)
    acc = acc + b_ref[...]                    # (4*Ch, cols), lane-broadcast bias

    # Gate extraction = cheap sublane slices; gate order i, f, g, o.
    gi = act(acc[0 * Ch:1 * Ch, :])
    gf = act(acc[1 * Ch:2 * Ch, :])
    gg = act(acc[2 * Ch:3 * Ch, :])
    go = act(acc[3 * Ch:4 * Ch, :])

    c = c_ref[...]                            # cell state stays f32
    cg = act(c)
    ci = jax.nn.sigmoid(gi + cg * act(wci_ref[...])).astype(f32)
    cf = jax.nn.sigmoid(gf + cg * act(wcf_ref[...])).astype(f32)
    cc = cf * c + ci * jnp.tanh(gg).astype(f32)                     # f32 accumulate
    co = jax.nn.sigmoid(go + act(cc) * act(wco_ref[...])).astype(f32)

    ch_ref[...] = (co * jnp.tanh(cc)).astype(ch_ref.dtype)
    cc_ref[...] = cc


# ----------------------------------------------------------------------------
# One-time parameter preparation (hoisted out of the per-call path).
# ----------------------------------------------------------------------------
def prepare_convlstm_params(params, batch, height, width):
    K = params["wx"].shape[0]
    Cin = params["wx"].shape[2]
    Ch = params["wh"].shape[2]
    HW = height * width
    N = batch * HW
    Kdim = K * K * (Cin + Ch)
    Kdim_pad = _round_up(Kdim, 128)   # clean bf16 (16,128) tiles, unmasked lanes

    # Fused conv weight in (channel, ky, kx)-major contraction order -- the
    # same ordering lax.conv_general_dilated_patches produces.
    w_all = jnp.concatenate([params["wx"], params["wh"]], axis=2)   # (K,K,Cin+Ch,4Ch)
    w_t = jnp.transpose(w_all, (3, 2, 0, 1)).reshape(4 * Ch, Kdim)
    w_t = jnp.pad(w_t, ((0, 0), (0, Kdim_pad - Kdim))).astype(jnp.bfloat16)

    bias = params["bx"].reshape(4 * Ch, 1).astype(jnp.float32)

    def peep(w):  # (1, Ch, H, W) -> (Ch, batch*H*W), broadcast over batch (tiny)
        p = w.reshape(Ch, HW).astype(jnp.float32)
        return jnp.broadcast_to(p[:, None, :], (Ch, batch, HW)).reshape(Ch, N)

    return {
        "w": w_t, "b": bias,
        "wci": peep(params["wci"]), "wcf": peep(params["wcf"]),
        "wco": peep(params["wco"]),
        "meta": dict(K=K, Cin=Cin, Ch=Ch, B=batch, H=height, W=width,
                     HW=HW, N=N, Kdim=Kdim, Kdim_pad=Kdim_pad),
    }


# ----------------------------------------------------------------------------
# Layout helpers.
# ----------------------------------------------------------------------------
def nchw_to_t(a):
    """(B, C, H, W) -> kernel layout (C, B*H*W)."""
    B, C, H, W = a.shape
    return jnp.transpose(a, (1, 0, 2, 3)).reshape(C, B * H * W)


def t_to_nchw(a_t, batch, height, width):
    """kernel layout (C, B*H*W) -> (B, C, H, W)."""
    C = a_t.shape[0]
    return jnp.transpose(a_t.reshape(C, batch, height, width), (1, 0, 2, 3))


# ----------------------------------------------------------------------------
# ConvLSTM cell, kernel-layout states (recurrence-friendly entry point).
# ----------------------------------------------------------------------------
def convlstm_cell_t(x, h_t, c_t, kp, *, gate_dtype=jnp.float32,
                    ch_dtype=jnp.float32, block_cols=None):
    """x: (B, Cin, H, W); h_t, c_t: (Ch, B*H*W).  Returns (ch_t, cc_t)."""
    m = kp["meta"]
    B, Cin, Ch, H, W = m["B"], m["Cin"], m["Ch"], m["H"], m["W"]
    K, Kdim, Kdim_pad, N = m["K"], m["Kdim"], m["Kdim_pad"], m["N"]
    pad = (K - 1) // 2

    assert x.shape == (B, Cin, H, W), x.shape
    assert h_t.shape == (Ch, N) and c_t.shape == (Ch, N)
    assert N % 128 == 0 and Ch % 8 == 0

    # --- im2col: one fused XLA op, output already in kernel layout ----------
    # (C, N, H, W) dimension numbers => channel-major patch features on the
    # leading/sublane axis and flattened (batch, h, w) on the lane axis.
    xh = jnp.concatenate(
        [jnp.transpose(x, (1, 0, 2, 3)).astype(jnp.bfloat16),
         h_t.reshape(Ch, B, H, W).astype(jnp.bfloat16)], axis=0)
    patches = jax.lax.conv_general_dilated_patches(
        xh, (K, K), (1, 1), [(pad, pad), (pad, pad)],
        dimension_numbers=("CNHW", "OIHW", "CNHW"))        # (Kdim, B, H, W)
    patches = patches.reshape(Kdim, N)
    if Kdim_pad != Kdim:   # zero patch rows meet zero weight lanes: exact no-op
        patches = jnp.pad(patches, ((0, Kdim_pad - Kdim), (0, 0)))

    c_t = c_t.astype(jnp.float32)

    if block_cols is None:
        block_cols = _pick_block_cols(N)
    n_blocks = N // block_cols

    # VMEM budget: double-buffered pipeline blocks + resident weight/bias +
    # f32 matmul result; explicit limit so bigger blocks aren't clamped by the
    # scoped default (16 MiB v5e / 32 MiB v6e+), capped under v7x's 64 MiB.
    est = (2 * (Kdim_pad * block_cols * 2                 # patches (bf16)
                + 4 * Ch * Kdim_pad * 2                   # fused weight (bf16)
                + 4 * Ch * 4                              # bias
                + 4 * Ch * block_cols * 4                 # c + 3 peepholes
                + Ch * block_cols * (jnp.dtype(ch_dtype).itemsize + 4))  # ch + cc
           + 4 * Ch * block_cols * 4)                     # f32 matmul result
    vmem_limit = int(min(48 * 2 ** 20, max(16 * 2 ** 20, 2 * est)))

    kernel = functools.partial(convlstm_kernel, hidden_channels=Ch,
                               gate_dtype=gate_dtype)

    col_spec = pl.BlockSpec((Ch, block_cols), lambda n: (0, n))
    grid_spec = pltpu.PrefetchScalarGridSpec(
        num_scalar_prefetch=0,
        grid=(n_blocks,),
        in_specs=[
            pl.BlockSpec((Kdim_pad, block_cols), lambda n: (0, n)),  # patches
            pl.BlockSpec((4 * Ch, Kdim_pad), lambda n: (0, 0)),      # weight (resident)
            pl.BlockSpec((4 * Ch, 1), lambda n: (0, 0)),             # bias (resident)
            col_spec,                                                # c
            col_spec,                                                # wci (batch-bcast)
            col_spec,                                                # wcf
            col_spec,                                                # wco
        ],
        out_specs=(col_spec, col_spec),                              # ch, cc
    )

    ch_t, cc_t = pl.pallas_call(
        kernel,
        out_shape=(jax.ShapeDtypeStruct((Ch, N), ch_dtype),
                   jax.ShapeDtypeStruct((Ch, N), jnp.float32)),
        grid_spec=grid_spec,
        compiler_params=pltpu.CompilerParams(
            dimension_semantics=("parallel",),
            vmem_limit_bytes=vmem_limit),
    )(patches, kp["w"], kp["b"], c_t, kp["wci"], kp["wcf"], kp["wco"])
    return ch_t, cc_t


def convlstm_cell(x, h, c, kp, **kwargs):
    """NCHW-in / NCHW-out convenience wrapper (matches the PyTorch forward)."""
    m = kp["meta"]
    ch_t, cc_t = convlstm_cell_t(x, nchw_to_t(h), nchw_to_t(c), kp, **kwargs)
    return (t_to_nchw(ch_t, m["B"], m["H"], m["W"]),
            t_to_nchw(cc_t, m["B"], m["H"], m["W"]))


# ----------------------------------------------------------------------------
# Pure-JAX reference (lax conv) for verification.
# ----------------------------------------------------------------------------
def convlstm_ref(x, h, c, params, *, match_bf16=False):
    """Reference cell.  With match_bf16=True the conv operands are rounded to
    bf16 (like the kernel's MXU path) so the comparison is tight."""
    K = params["wx"].shape[0]
    pad = (K - 1) // 2
    Ch = h.shape[1]

    q = (lambda t: t.astype(jnp.bfloat16).astype(jnp.float32)) if match_bf16 \
        else (lambda t: t)

    def conv(inp, w_kkio):
        w = jnp.transpose(q(w_kkio), (3, 2, 0, 1))              # OIHW
        return jax.lax.conv_general_dilated(
            q(inp), w, (1, 1), [(pad, pad), (pad, pad)],
            dimension_numbers=("NCHW", "OIHW", "NCHW"),
            precision=jax.lax.Precision.HIGHEST)

    g = (conv(x, params["wx"]) + params["bx"][None, :, None, None]
         + conv(h, params["wh"]))
    gi, gf, gg, go = (g[:, i * Ch:(i + 1) * Ch] for i in range(4))

    ci = jax.nn.sigmoid(gi + c * params["wci"])
    cf = jax.nn.sigmoid(gf + c * params["wcf"])
    cc = cf * c + ci * jnp.tanh(gg)
    co = jax.nn.sigmoid(go + cc * params["wco"])
    ch = co * jnp.tanh(cc)
    return ch, cc


if __name__ == "__main__":
    B, Cin, Ch, H, W, K = 2, 4, 32, 16, 16, 3

    key = jax.random.PRNGKey(0)
    ks = jax.random.split(key, 9)

    # Deterministic synthetic parameters (gate order on the output axis: i,f,c,o).
    params = {
        "wx":  0.1 * jax.random.normal(ks[0], (K, K, Cin, 4 * Ch), jnp.float32),
        "wh":  0.1 * jax.random.normal(ks[1], (K, K, Ch, 4 * Ch), jnp.float32),
        "bx":  0.1 * jax.random.normal(ks[2], (4 * Ch,), jnp.float32),
        # Peepholes (PyTorch init_hidden zeros them; nonzero here to test path).
        "wci": 0.1 * jax.random.normal(ks[3], (1, Ch, H, W), jnp.float32),
        "wcf": 0.1 * jax.random.normal(ks[4], (1, Ch, H, W), jnp.float32),
        "wco": 0.1 * jax.random.normal(ks[5], (1, Ch, H, W), jnp.float32),
    }

    x = jax.random.normal(ks[6], (B, Cin, H, W), jnp.float32)
    h = jax.random.normal(ks[7], (B, Ch, H, W), jnp.float32)
    c = jax.random.normal(ks[8], (B, Ch, H, W), jnp.float32)

    # One-time parameter prep (hoisted out of the per-call path).
    kp = prepare_convlstm_params(params, B, H, W)

    # --- single-cell forward (NCHW API, f32 gate math) + tight check --------
    cell = jax.jit(lambda x_, h_, c_: convlstm_cell(x_, h_, c_, kp))
    ch_out, cc_out = cell(x, h, c)
    jax.block_until_ready((ch_out, cc_out))

    ch_m, cc_m = convlstm_ref(x, h, c, params, match_bf16=True)
    assert jnp.allclose(ch_out, ch_m, atol=2e-3, rtol=2e-3), "ch mismatch (bf16-matched ref)"
    assert jnp.allclose(cc_out, cc_m, atol=2e-3, rtol=2e-3), "cc mismatch (bf16-matched ref)"

    ch_f, cc_f = convlstm_ref(x, h, c, params)
    assert jnp.allclose(ch_out, ch_f, atol=1e-1), "ch mismatch (f32 ref)"
    assert jnp.allclose(cc_out, cc_f, atol=1e-1), "cc mismatch (f32 ref)"

    # --- short recurrence: h/c stay in kernel layout across steps, ch emitted
    #     in bf16, bf16 gate math on v6e/v7x.  This is a plumbing sanity check
    #     for the mixed-precision recurrent path (tight numerics are validated
    #     by the f32 single-cell check above), hence the loose tolerance. -----
    T = 3
    xs = 0.5 * jax.random.normal(jax.random.PRNGKey(1), (T, B, Cin, H, W),
                                 jnp.float32)
    gate_dt = _default_gate_dtype()
    step_t = jax.jit(lambda x_, h_, c_: convlstm_cell_t(
        x_, h_, c_, kp, gate_dtype=gate_dt, ch_dtype=jnp.bfloat16))

    h_t = nchw_to_t(h).astype(jnp.bfloat16)
    c_t = nchw_to_t(c)
    for t in range(T):
        h_t, c_t = step_t(xs[t], h_t, c_t)
    jax.block_until_ready((h_t, c_t))

    h_r, c_r = h, c
    for t in range(T):
        h_r, c_r = convlstm_ref(xs[t], h_r, c_r, params, match_bf16=True)

    ch_seq = t_to_nchw(h_t.astype(jnp.float32), B, H, W)
    cc_seq = t_to_nchw(c_t, B, H, W)
    assert jnp.allclose(ch_seq, h_r, atol=1.5e-1), "ch mismatch (sequence)"
    assert jnp.allclose(cc_seq, c_r, atol=2.0e-1), "cc mismatch (sequence)"

    print("KERNEL_OK")
</pallas_src>

<mosaic_0001>
module attributes {stable_mosaic.version = 11 : i64} {
  func.func @convlstm_kernel(%arg0: i32, %arg1: memref<384x512xbf16, #tpu.memory_space<vmem>>, %arg2: memref<128x384xbf16, #tpu.memory_space<vmem>>, %arg3: memref<128x1xf32, #tpu.memory_space<vmem>>, %arg4: memref<32x512xf32, #tpu.memory_space<vmem>>, %arg5: memref<32x512xf32, #tpu.memory_space<vmem>>, %arg6: memref<32x512xf32, #tpu.memory_space<vmem>>, %arg7: memref<32x512xf32, #tpu.memory_space<vmem>>, %arg8: memref<32x512xf32, #tpu.memory_space<vmem>>, %arg9: memref<32x512xf32, #tpu.memory_space<vmem>>) attributes {dimension_semantics = [#tpu.dimension_semantics<parallel>], iteration_bounds = array<i64: 1>, scalar_prefetch = 0 : i64, scratch_operands = 0 : i64, tpu.core_type = #tpu.core_type<tc>, window_params = [{transform_indices = @transform_0, window_bounds = array<i64: 384, 512>}, {pipeline_mode = #tpu.pipeline_mode<synchronous>, transform_indices = @transform_1, window_bounds = array<i64: 128, 384>}, {pipeline_mode = #tpu.pipeline_mode<synchronous>, transform_indices = @transform_2, window_bounds = array<i64: 128, 1>}, {transform_indices = @transform_3, window_bounds = array<i64: 32, 512>}, {transform_indices = @transform_4, window_bounds = array<i64: 32, 512>}, {transform_indices = @transform_5, window_bounds = array<i64: 32, 512>}, {transform_indices = @transform_6, window_bounds = array<i64: 32, 512>}, {transform_indices = @transform_7, window_bounds = array<i64: 32, 512>}, {transform_indices = @transform_8, window_bounds = array<i64: 32, 512>}]} {
    %c0 = arith.constant 0 : index
    %c0_0 = arith.constant 0 : index
    %0 = vector.load %arg2[%c0, %c0_0] : memref<128x384xbf16, #tpu.memory_space<vmem>>, vector<128x384xbf16>
    %c0_1 = arith.constant 0 : index
    %c0_2 = arith.constant 0 : index
    %1 = vector.load %arg1[%c0_1, %c0_2] : memref<384x512xbf16, #tpu.memory_space<vmem>>, vector<384x512xbf16>
    %cst = arith.constant dense<0.000000e+00> : vector<128x512xf32>
    %2 = tpu.matmul %0, %1, %cst {dimension_numbers = #tpu.dot_dimension_numbers<[1], [0], [0], [1], [0, 0, 1, 1], [], []>} : vector<128x384xbf16>, vector<384x512xbf16>, vector<128x512xf32> -> vector<128x512xf32>
    %c0_3 = arith.constant 0 : index
    %c0_4 = arith.constant 0 : index
    %3 = vector.load %arg3[%c0_3, %c0_4] : memref<128x1xf32, #tpu.memory_space<vmem>>, vector<128x1xf32>
    %4 = vector.broadcast %3 : vector<128x1xf32> to vector<128x512xf32>
    %5 = arith.addf %2, %4 : vector<128x512xf32>
    %6 = vector.extract_strided_slice %5 {offsets = [0, 0], sizes = [32, 512], strides = [1, 1]} : vector<128x512xf32> to vector<32x512xf32>
    %7 = vector.extract_strided_slice %5 {offsets = [32, 0], sizes = [32, 512], strides = [1, 1]} : vector<128x512xf32> to vector<32x512xf32>
    %8 = vector.extract_strided_slice %5 {offsets = [64, 0], sizes = [32, 512], strides = [1, 1]} : vector<128x512xf32> to vector<32x512xf32>
    %9 = vector.extract_strided_slice %5 {offsets = [96, 0], sizes = [32, 512], strides = [1, 1]} : vector<128x512xf32> to vector<32x512xf32>
    %c0_5 = arith.constant 0 : index
    %c0_6 = arith.constant 0 : index
    %10 = vector.load %arg4[%c0_5, %c0_6] : memref<32x512xf32, #tpu.memory_space<vmem>>, vector<32x512xf32>
    %c0_7 = arith.constant 0 : index
    %c0_8 = arith.constant 0 : index
    %11 = vector.load %arg5[%c0_7, %c0_8] : memref<32x512xf32, #tpu.memory_space<vmem>>, vector<32x512xf32>
    %12 = arith.mulf %10, %11 : vector<32x512xf32>
    %13 = arith.addf %6, %12 : vector<32x512xf32>
    %14 = arith.negf %13 : vector<32x512xf32>
    %15 = math.exp %14 : vector<32x512xf32>
    %cst_9 = arith.constant 1.000000e+00 : f32
    %16 = vector.broadcast %cst_9 : f32 to vector<32x512xf32>
    %17 = arith.addf %16, %15 : vector<32x512xf32>
    %18 = arith.divf %16, %17 : vector<32x512xf32>
    %c0_10 = arith.constant 0 : index
    %c0_11 = arith.constant 0 : index
    %19 = vector.load %arg6[%c0_10, %c0_11] : memref<32x512xf32, #tpu.memory_space<vmem>>, vector<32x512xf32>
    %20 = arith.mulf %10, %19 : vector<32x512xf32>
    %21 = arith.addf %7, %20 : vector<32x512xf32>
    %22 = arith.negf %21 : vector<32x512xf32>
    %23 = math.exp %22 : vector<32x512xf32>
    %cst_12 = arith.constant 1.000000e+00 : f32
    %24 = vector.broadcast %cst_12 : f32 to vector<32x512xf32>
    %25 = arith.addf %24, %23 : vector<32x512xf32>
    %26 = arith.divf %24, %25 : vector<32x512xf32>
    %27 = arith.mulf %26, %10 : vector<32x512xf32>
    %28 = math.tanh %8 : vector<32x512xf32>
    %29 = arith.mulf %18, %28 : vector<32x512xf32>
    %30 = arith.addf %27, %29 : vector<32x512xf32>
    %c0_13 = arith.constant 0 : index
    %c0_14 = arith.constant 0 : index
    %31 = vector.load %arg7[%c0_13, %c0_14] : memref<32x512xf32, #tpu.memory_space<vmem>>, vector<32x512xf32>
    %32 = arith.mulf %30, %31 : vector<32x512xf32>
    %33 = arith.addf %9, %32 : vector<32x512xf32>
    %34 = arith.negf %33 : vector<32x512xf32>
    %35 = math.exp %34 : vector<32x512xf32>
    %cst_15 = arith.constant 1.000000e+00 : f32
    %36 = vector.broadcast %cst_15 : f32 to vector<32x512xf32>
    %37 = arith.addf %36, %35 : vector<32x512xf32>
    %38 = arith.divf %36, %37 : vector<32x512xf32>
    %39 = math.tanh %30 : vector<32x512xf32>
    %40 = arith.mulf %38, %39 : vector<32x512xf32>
    %c0_16 = arith.constant 0 : index
    %c0_17 = arith.constant 0 : index
    %41 = vector.load %arg8[%c0_16, %c0_17] : memref<32x512xf32, #tpu.memory_space<vmem>>, vector<32x512xf32>
    tpu.vector_store %arg8[%c0_16, %c0_17], %40 {strides = array<i32>} : memref<32x512xf32, #tpu.memory_space<vmem>>, vector<32x512xf32>,
    %c0_18 = arith.constant 0 : index
    %c0_19 = arith.constant 0 : index
    %42 = vector.load %arg9[%c0_18, %c0_19] : memref<32x512xf32, #tpu.memory_space<vmem>>, vector<32x512xf32>
    tpu.vector_store %arg9[%c0_18, %c0_19], %30 {strides = array<i32>} : memref<32x512xf32, #tpu.memory_space<vmem>>, vector<32x512xf32>,
    return
  }
  func.func @transform_0(%arg0: i32) -> (i32, i32) {
    %c0_i32 = arith.constant 0 : i32
    %c0_i32_0 = arith.constant 0 : i32
    return %c0_i32, %arg0 : i32, i32
  }
  func.func @transform_1(%arg0: i32) -> (i32, i32) {
    %c0_i32 = arith.constant 0 : i32
    %c0_i32_0 = arith.constant 0 : i32
    %c0_i32_1 = arith.constant 0 : i32
    return %c0_i32, %c0_i32_0 : i32, i32
  }
  func.func @transform_2(%arg0: i32) -> (i32, i32) {
    %c0_i32 = arith.constant 0 : i32
    %c0_i32_0 = arith.constant 0 : i32
    %c0_i32_1 = arith.constant 0 : i32
    return %c0_i32, %c0_i32_0 : i32, i32
  }
  func.func @transform_3(%arg0: i32) -> (i32, i32) {
    %c0_i32 = arith.constant 0 : i32
    %c0_i32_0 = arith.constant 0 : i32
    return %c0_i32, %arg0 : i32, i32
  }
  func.func @transform_4(%arg0: i32) -> (i32, i32) {
    %c0_i32 = arith.constant 0 : i32
    %c0_i32_0 = arith.constant 0 : i32
    return %c0_i32, %arg0 : i32, i32
  }
  func.func @transform_5(%arg0: i32) -> (i32, i32) {
    %c0_i32 = arith.constant 0 : i32
    %c0_i32_0 = arith.constant 0 : i32
    return %c0_i32, %arg0 : i32, i32
  }
  func.func @transform_6(%arg0: i32) -> (i32, i32) {
    %c0_i32 = arith.constant 0 : i32
    %c0_i32_0 = arith.constant 0 : i32
    return %c0_i32, %arg0 : i32, i32
  }
  func.func @transform_7(%arg0: i32) -> (i32, i32) {
    %c0_i32 = arith.constant 0 : i32
    %c0_i32_0 = arith.constant 0 : i32
    return %c0_i32, %arg0 : i32, i32
  }
  func.func @transform_8(%arg0: i32) -> (i32, i32) {
    %c0_i32 = arith.constant 0 : i32
    %c0_i32_0 = arith.constant 0 : i32
    return %c0_i32, %arg0 : i32, i32
  }
}

</mosaic_0001>

<llo_original>
// kernel: _lambda_.1
$region0: #{_lambda_.1}
  #allocation0 [shape = 'u32[]', space=smem, size = 0x4, offset = 0x4, fixed_abs, tag = 'smem constant byte address 0x4 - core index']
  #allocation1 [shape = 'u32[72,128]{1,0:T(1,128)}', space=vmem, size = 0x9000, scoped, tag = 'internal scratch']
  %s0 = inlined_call_operand.vmem [shape: bf16[384,512], index: 0, kind: input, shape index: {}]
  %s1 = inlined_call_operand.vmem [shape: bf16[128,384], index: 1, kind: input, shape index: {}]
  %s2 = inlined_call_operand.vmem [shape: f32[128,1], index: 2, kind: input, shape index: {}]
  %s3 = inlined_call_operand.vmem [shape: f32[32,512], index: 3, kind: input, shape index: {}]
  %s4 = inlined_call_operand.vmem [shape: f32[32,512], index: 4, kind: input, shape index: {}]
  %s5 = inlined_call_operand.vmem [shape: f32[32,512], index: 5, kind: input, shape index: {}]
  %s6 = inlined_call_operand.vmem [shape: f32[32,512], index: 6, kind: input, shape index: {}]
  %s7 = inlined_call_operand.vmem [shape: f32[32,512], index: 7, kind: output, shape index: {0}]
  %s8 = inlined_call_operand.vmem [shape: f32[32,512], index: 8, kind: output, shape index: {1}]
  %9 = xla_tuple %s7, %s8
  %s10 = sld [smem:[#allocation0]]
  $region46: #{_lambda_.1} parent=0
    _
  %s12 = ssub.s32 1, %s10
  %s13 = scalar_select 0, %s12, %s10
  // Predicated region
  $region2: #{_lambda_.1} parent=0 // pred_check
    _
  $region3: #{_lambda_.1} parent=0 // pred_check_branch
    %15 = sbr.rel (0) target = $region5
  $region4: #{_lambda_.1} parent=0 // pred_region
    _
  $region5: #{_lambda_.1} parent=0 // pred_fallthru
    _
  // Predicated region
  $region6: #{_lambda_.1} parent=0 // pred_check
    _
  $region7: #{_lambda_.1} parent=0 // pred_check_branch
    %17 = sbr.rel (0) target = $region9
  $region8: #{_lambda_.1} parent=0 // pred_region
    _
  $region9: #{_lambda_.1} parent=0 // pred_fallthru
    _
  // Predicated region
  $region10: #{_lambda_.1} parent=0 // pred_check
    _
  $region11: #{_lambda_.1} parent=0 // pred_check_branch
    %19 = sbr.rel (0) target = $region13
  $region12: #{_lambda_.1} parent=0 // pred_region
    _
  $region13: #{_lambda_.1} parent=0 // pred_fallthru
    _
  // Predicated region
  $region14: #{_lambda_.1} parent=0 // pred_check
    _
  $region15: #{_lambda_.1} parent=0 // pred_check_branch
    %21 = sbr.rel (0) target = $region17
  $region16: #{_lambda_.1} parent=0 // pred_region
    _
  $region17: #{_lambda_.1} parent=0 // pred_fallthru
    _
  // Predicated region
  $region18: #{_lambda_.1} parent=0 // pred_check
    _
  $region19: #{_lambda_.1} parent=0 // pred_check_branch
    %23 = sbr.rel (0) target = $region21
  $region20: #{_lambda_.1} parent=0 // pred_region
    _
  $region21: #{_lambda_.1} parent=0 // pred_fallthru
    _
  // Predicated region
  $region22: #{_lambda_.1} parent=0 // pred_check
    _
  $region23: #{_lambda_.1} parent=0 // pred_check_branch
    %25 = sbr.rel (0) target = $region25
  $region24: #{_lambda_.1} parent=0 // pred_region
    _
  $region25: #{_lambda_.1} parent=0 // pred_fallthru
    _
  // Predicated region
  $region26: #{_lambda_.1} parent=0 // pred_check
    _
  $region27: #{_lambda_.1} parent=0 // pred_check_branch
    %27 = sbr.rel (0) target = $region29
  $region28: #{_lambda_.1} parent=0 // pred_region
    _
  $region29: #{_lambda_.1} parent=0 // pred_fallthru
    _
  %v28 = vld [vmem:[%s1] sm:$0xff]
  %v29 = vld [vmem:[%s1 + $0x8] sm:$0xf]
  %v30 = vld [vmem:[%s1 + $0xc] sm:$0xff]
  %v31 = vld [vmem:[%s1 + $0x14] sm:$0xf]
  %v32 = vld [vmem:[%s1 + $0x18] sm:$0xff]
  %v33 = vld [vmem:[%s1 + $0x20] sm:$0xf]
  %v34 = vld [vmem:[%s1 + $0x24] sm:$0xff]
  %v35 = vld [vmem:[%s1 + $0x2c] sm:$0xf]
  %v36 = vld [vmem:[%s1 + $0x30] sm:$0xff]
  %v37 = vld [vmem:[%s1 + $0x38] sm:$0xf]
  %v38 = vld [vmem:[%s1 + $0x3c] sm:$0xff]
  %v39 = vld [vmem:[%s1 + $0x44] sm:$0xf]
  %v40 = vld [vmem:[%s1 + $0x48] sm:$0xff]
  %v41 = vld [vmem:[%s1 + $0x50] sm:$0xf]
  %v42 = vld [vmem:[%s1 + $0x54] sm:$0xff]
  %v43 = vld [vmem:[%s1 + $0x5c] sm:$0xf]
  %v44 = vld [vmem:[%s1 + $0x60] sm:$0xff]
  %v45 = vld [vmem:[%s1 + $0x68] sm:$0xf]
  %v46 = vld [vmem:[%s1 + $0x6c] sm:$0xff]
  %v47 = vld [vmem:[%s1 + $0x74] sm:$0xf]
  %v48 = vld [vmem:[%s1 + $0x78] sm:$0xff]
  %v49 = vld [vmem:[%s1 + $0x80] sm:$0xf]
  %v50 = vld [vmem:[%s1 + $0x84] sm:$0xff]
  %v51 = vld [vmem:[%s1 + $0x8c] sm:$0xf]
  %v52 = vld [vmem:[%s1 + $0x90] sm:$0xff]
  %v53 = vld [vmem:[%s1 + $0x98] sm:$0xf]
  %v54 = vld [vmem:[%s1 + $0x9c] sm:$0xff]
  %v55 = vld [vmem:[%s1 + $0xa4] sm:$0xf]
  %v56 = vld [vmem:[%s1 + $0xa8] sm:$0xff]
  %v57 = vld [vmem:[%s1 + $0xb0] sm:$0xf]
  %v58 = vld [vmem:[%s1 + $0xb4] sm:$0xff]
  %v59 = vld [vmem:[%s1 + $0xbc] sm:$0xf]
  %v60 = vld [vmem:[%s0] sm:$0xff]
  %v61 = vld [vmem:[%s0 + $0x8] sm:$0xff]
  %v62 = vld [vmem:[%s0 + $0x10] sm:$0xff]
  %v63 = vld [vmem:[%s0 + $0x18] sm:$0xff]
  %v64 = vld [vmem:[%s0 + $0x20] sm:$0xff]
  %v65 = vld [vmem:[%s0 + $0x28] sm:$0xff]
  %v66 = vld [vmem:[%s0 + $0x30] sm:$0xff]
  %v67 = vld [vmem:[%s0 + $0x38] sm:$0xff]
  %v68 = vld [vmem:[%s0 + $0x40] sm:$0xff]
  %v69 = vld [vmem:[%s0 + $0x48] sm:$0xff]
  %v70 = vld [vmem:[%s0 + $0x50] sm:$0xff]
  %v71 = vld [vmem:[%s0 + $0x58] sm:$0xff]
  %v72 = vld [vmem:[%s0 + $0x60] sm:$0xff]
  %v73 = vld [vmem:[%s0 + $0x68] sm:$0xff]
  %v74 = vld [vmem:[%s0 + $0x70] sm:$0xff]
  %v75 = vld [vmem:[%s0 + $0x78] sm:$0xff]
  %v76 = vld [vmem:[%s0 + $0x80] sm:$0xff]
  %v77 = vld [vmem:[%s0 + $0x88] sm:$0xff]
  %v78 = vld [vmem:[%s0 + $0x90] sm:$0xff]
  %v79 = vld [vmem:[%s0 + $0x98] sm:$0xff]
  %v80 = vld [vmem:[%s0 + $0xa0] sm:$0xff]
  %v81 = vld [vmem:[%s0 + $0xa8] sm:$0xff]
  %v82 = vld [vmem:[%s0 + $0xb0] sm:$0xff]
  %v83 = vld [vmem:[%s0 + $0xb8] sm:$0xff]
  %v84 = vld [vmem:[%s0 + $0xc0] sm:$0xff]
  %v85 = vld [vmem:[%s0 + $0xc8] sm:$0xff]
  %v86 = vld [vmem:[%s0 + $0xd0] sm:$0xff]
  %v87 = vld [vmem:[%s0 + $0xd8] sm:$0xff]
  %v88 = vld [vmem:[%s0 + $0xe0] sm:$0xff]
  %v89 = vld [vmem:[%s0 + $0xe8] sm:$0xff]
  %v90 = vld [vmem:[%s0 + $0xf0] sm:$0xff]
  %v91 = vld [vmem:[%s0 + $0xf8] sm:$0xff]
  %v92 = vld [vmem:[%s0 + $0x100] sm:$0xff]
  %v93 = vld [vmem:[%s0 + $0x108] sm:$0xff]
  %v94 = vld [vmem:[%s0 + $0x110] sm:$0xff]
  %v95 = vld [vmem:[%s0 + $0x118] sm:$0xff]
  %v96 = vld [vmem:[%s0 + $0x120] sm:$0xff]
  %v97 = vld [vmem:[%s0 + $0x128] sm:$0xff]
  %v98 = vld [vmem:[%s0 + $0x130] sm:$0xff]
  %v99 = vld [vmem:[%s0 + $0x138] sm:$0xff]
  %v100 = vld [vmem:[%s0 + $0x140] sm:$0xff]
  %v101 = vld [vmem:[%s0 + $0x148] sm:$0xff]
  %v102 = vld [vmem:[%s0 + $0x150] sm:$0xff]
  %v103 = vld [vmem:[%s0 + $0x158] sm:$0xff]
  %v104 = vld [vmem:[%s0 + $0x160] sm:$0xff]
  %v105 = vld [vmem:[%s0 + $0x168] sm:$0xff]
  %v106 = vld [vmem:[%s0 + $0x170] sm:$0xff]
  %v107 = vld [vmem:[%s0 + $0x178] sm:$0xff]
  %v108 = vld [vmem:[%s0 + $0x180] sm:$0xff]
  %v109 = vld [vmem:[%s0 + $0x188] sm:$0xff]
  %v110 = vld [vmem:[%s0 + $0x190] sm:$0xff]
  %v111 = vld [vmem:[%s0 + $0x198] sm:$0xff]
  %v112 = vld [vmem:[%s0 + $0x1a0] sm:$0xff]
  %v113 = vld [vmem:[%s0 + $0x1a8] sm:$0xff]
  %v114 = vld [vmem:[%s0 + $0x1b0] sm:$0xff]
  %v115 = vld [vmem:[%s0 + $0x1b8] sm:$0xff]
  %v116 = vld [vmem:[%s0 + $0x1c0] sm:$0xff]
  %v117 = vld [vmem:[%s0 + $0x1c8] sm:$0xff]
  %v118 = vld [vmem:[%s0 + $0x1d0] sm:$0xff]
  %v119 = vld [vmem:[%s0 + $0x1d8] sm:$0xff]
  %v120 = vld [vmem:[%s0 + $0x1e0] sm:$0xff]
  %v121 = vld [vmem:[%s0 + $0x1e8] sm:$0xff]
  %v122 = vld [vmem:[%s0 + $0x1f0] sm:$0xff]
  %v123 = vld [vmem:[%s0 + $0x1f8] sm:$0xff]
  %v124 = vld [vmem:[%s0 + $0x200] sm:$0xff]
  %v125 = vld [vmem:[%s0 + $0x208] sm:$0xff]
  %v126 = vld [vmem:[%s0 + $0x210] sm:$0xff]
  %v127 = vld [vmem:[%s0 + $0x218] sm:$0xff]
  %v128 = vld [vmem:[%s0 + $0x220] sm:$0xff]
  %v129 = vld [vmem:[%s0 + $0x228] sm:$0xff]
  %v130 = vld [vmem:[%s0 + $0x230] sm:$0xff]
  %v131 = vld [vmem:[%s0 + $0x238] sm:$0xff]
  %v132 = vld [vmem:[%s0 + $0x240] sm:$0xff]
  %v133 = vld [vmem:[%s0 + $0x248] sm:$0xff]
  %v134 = vld [vmem:[%s0 + $0x250] sm:$0xff]
  %v135 = vld [vmem:[%s0 + $0x258] sm:$0xff]
  %v136 = vld [vmem:[%s0 + $0x260] sm:$0xff]
  %v137 = vld [vmem:[%s0 + $0x268] sm:$0xff]
  %v138 = vld [vmem:[%s0 + $0x270] sm:$0xff]
  %v139 = vld [vmem:[%s0 + $0x278] sm:$0xff]
  %v140 = vld [vmem:[%s0 + $0x280] sm:$0xff]
  %v141 = vld [vmem:[%s0 + $0x288] sm:$0xff]
  %v142 = vld [vmem:[%s0 + $0x290] sm:$0xff]
  %v143 = vld [vmem:[%s0 + $0x298] sm:$0xff]
  %v144 = vld [vmem:[%s0 + $0x2a0] sm:$0xff]
  %v145 = vld [vmem:[%s0 + $0x2a8] sm:$0xff]
  %v146 = vld [vmem:[%s0 + $0x2b0] sm:$0xff]
  %v147 = vld [vmem:[%s0 + $0x2b8] sm:$0xff]
  %v148 = vld [vmem:[%s0 + $0x2c0] sm:$0xff]
  %v149 = vld [vmem:[%s0 + $0x2c8] sm:$0xff]
  %v150 = vld [vmem:[%s0 + $0x2d0] sm:$0xff]
  %v151 = vld [vmem:[%s0 + $0x2d8] sm:$0xff]
  %v152 = vld [vmem:[%s0 + $0x2e0] sm:$0xff]
  %v153 = vld [vmem:[%s0 + $0x2e8] sm:$0xff]
  %v154 = vld [vmem:[%s0 + $0x2f0] sm:$0xff]
  %v155 = vld [vmem:[%s0 + $0x2f8] sm:$0xff]
  %v156 = vld [vmem:[%s2] sm:$0xff]
  %v157 = vld [vmem:[%s2 + $0x8] sm:$0xff]
  %v158 = vld [vmem:[%s2 + $0x10] sm:$0xff]
  %v159 = vld [vmem:[%s2 + $0x18] sm:$0xff]
  %v160 = vld [vmem:[%s2 + $0x20] sm:$0xff]
  %v161 = vld [vmem:[%s2 + $0x28] sm:$0xff]
  %v162 = vld [vmem:[%s2 + $0x30] sm:$0xff]
  %v163 = vld [vmem:[%s2 + $0x38] sm:$0xff]
  %v164 = vld [vmem:[%s2 + $0x40] sm:$0xff]
  %v165 = vld [vmem:[%s2 + $0x48] sm:$0xff]
  %v166 = vld [vmem:[%s2 + $0x50] sm:$0xff]
  %v167 = vld [vmem:[%s2 + $0x58] sm:$0xff]
  %v168 = vld [vmem:[%s2 + $0x60] sm:$0xff]
  %v169 = vld [vmem:[%s2 + $0x68] sm:$0xff]
  %v170 = vld [vmem:[%s2 + $0x70] sm:$0xff]
  %v171 = vld [vmem:[%s2 + $0x78] sm:$0xff]
  %173 = vset.pattern.permute.xlu0 0
  %174 = vperm.xlu0 %173, %v156
  %v175 = vpop.permute.xlu0 %174
  %178 = vset.pattern.permute.xlu0 0
  %179 = vperm.xlu0 %178, %v157
  %v180 = vpop.permute.xlu0 %179
  %183 = vset.pattern.permute.xlu0 0
  %184 = vperm.xlu0 %183, %v158
  %v185 = vpop.permute.xlu0 %184
  %188 = vset.pattern.permute.xlu0 0
  %189 = vperm.xlu0 %188, %v159
  %v190 = vpop.permute.xlu0 %189
  %193 = vset.pattern.permute.xlu0 0
  %194 = vperm.xlu0 %193, %v160
  %v195 = vpop.permute.xlu0 %194
  %198 = vset.pattern.permute.xlu0 0
  %199 = vperm.xlu0 %198, %v161
  %v200 = vpop.permute.xlu0 %199
  %203 = vset.pattern.permute.xlu0 0
  %204 = vperm.xlu0 %203, %v162
  %v205 = vpop.permute.xlu0 %204
  %208 = vset.pattern.permute.xlu0 0
  %209 = vperm.xlu0 %208, %v163
  %v210 = vpop.permute.xlu0 %209
  %213 = vset.pattern.permute.xlu0 0
  %214 = vperm.xlu0 %213, %v164
  %v215 = vpop.permute.xlu0 %214
  %218 = vset.pattern.permute.xlu0 0
  %219 = vperm.xlu0 %218, %v165
  %v220 = vpop.permute.xlu0 %219
  %223 = vset.pattern.permute.xlu0 0
  %224 = vperm.xlu0 %223, %v166
  %v225 = vpop.permute.xlu0 %224
  %228 = vset.pattern.permute.xlu0 0
  %229 = vperm.xlu0 %228, %v167
  %v230 = vpop.permute.xlu0 %229
  %233 = vset.pattern.permute.xlu0 0
  %234 = vperm.xlu0 %233, %v168
  %v235 = vpop.permute.xlu0 %234
  %238 = vset.pattern.permute.xlu0 0
  %239 = vperm.xlu0 %238, %v169
  %v240 = vpop.permute.xlu0 %239
  %243 = vset.pattern.permute.xlu0 0
  %244 = vperm.xlu0 %243, %v170
  %v245 = vpop.permute.xlu0 %244
  %248 = vset.pattern.permute.xlu0 0
  %249 = vperm.xlu0 %248, %v171
  %v250 = vpop.permute.xlu0 %249
  %v284 = vunpack.c.l.b16 %v28
  %v285 = vunpack.c.h.b16 %v28
  %v286 = vunpack.c.l.b16 %v29
  %v287 = vunpack.c.l.b16 %v30
  %v288 = vunpack.c.h.b16 %v30
  %v289 = vunpack.c.l.b16 %v31
  %v290 = vunpack.c.l.b16 %v32
  %v291 = vunpack.c.h.b16 %v32
  %v292 = vunpack.c.l.b16 %v33
  %v293 = vunpack.c.l.b16 %v34
  %v294 = vunpack.c.h.b16 %v34
  %v295 = vunpack.c.l.b16 %v35
  %v296 = vunpack.c.l.b16 %v36
  %v297 = vunpack.c.h.b16 %v36
  %v298 = vunpack.c.l.b16 %v37
  %v299 = vunpack.c.l.b16 %v38
  %v300 = vunpack.c.h.b16 %v38
  %v301 = vunpack.c.l.b16 %v39
  %v302 = vunpack.c.l.b16 %v40
  %v303 = vunpack.c.h.b16 %v40
  %v304 = vunpack.c.l.b16 %v41
  %v305 = vunpack.c.l.b16 %v42
  %v306 = vunpack.c.h.b16 %v42
  %v307 = vunpack.c.l.b16 %v43
  %v308 = vunpack.c.l.b16 %v44
  %v309 = vunpack.c.h.b16 %v44
  %v310 = vunpack.c.l.b16 %v45
  %v311 = vunpack.c.l.b16 %v46
  %v312 = vunpack.c.h.b16 %v46
  %v313 = vunpack.c.l.b16 %v47
  %v314 = vunpack.c.l.b16 %v48
  %v315 = vunpack.c.h.b16 %v48
  %v316 = vunpack.c.l.b16 %v49
  %v317 = vunpack.c.l.b16 %v50
  %v318 = vunpack.c.h.b16 %v50
  %v319 = vunpack.c.l.b16 %v51
  %v320 = vunpack.c.l.b16 %v52
  %v321 = vunpack.c.h.b16 %v52
  %v322 = vunpack.c.l.b16 %v53
  %v323 = vunpack.c.l.b16 %v54
  %v324 = vunpack.c.h.b16 %v54
  %v325 = vunpack.c.l.b16 %v55
  %v326 = vunpack.c.l.b16 %v56
  %v327 = vunpack.c.h.b16 %v56
  %v328 = vunpack.c.l.b16 %v57
  %v329 = vunpack.c.l.b16 %v58
  %v330 = vunpack.c.h.b16 %v58
  %v331 = vunpack.c.l.b16 %v59
  %v332 = vpack.c.b16 %v287, %v284
  %v333 = vpack.c.b16 %v288, %v285
  %v334 = vpack.c.b16 %v289, %v286
  %v335 = vpack.c.b16 %v293, %v290
  %v336 = vpack.c.b16 %v294, %v291
  %v337 = vpack.c.b16 %v295, %v292
  %v338 = vpack.c.b16 %v299, %v296
  %v339 = vpack.c.b16 %v300, %v297
  %v340 = vpack.c.b16 %v301, %v298
  %v341 = vpack.c.b16 %v305, %v302
  %v342 = vpack.c.b16 %v306, %v303
  %v343 = vpack.c.b16 %v307, %v304
  %v344 = vpack.c.b16 %v311, %v308
  %v345 = vpack.c.b16 %v312, %v309
  %v346 = vpack.c.b16 %v313, %v310
  %v347 = vpack.c.b16 %v317, %v314
  %v348 = vpack.c.b16 %v318, %v315
  %v349 = vpack.c.b16 %v319, %v316
  %v350 = vpack.c.b16 %v323, %v320
  %v351 = vpack.c.b16 %v324, %v321
  %v352 = vpack.c.b16 %v325, %v322
  %v353 = vpack.c.b16 %v329, %v326
  %v354 = vpack.c.b16 %v330, %v327
  %v355 = vpack.c.b16 %v331, %v328
  %v476 = vunpack.c.l.b16 %v60
  %v477 = vunpack.c.h.b16 %v60
  %v478 = vunpack.c.l.b16 %v61
  %v479 = vunpack.c.h.b16 %v61
  %v480 = vunpack.c.l.b16 %v62
  %v481 = vunpack.c.h.b16 %v62
  %v482 = vunpack.c.l.b16 %v63
  %v483 = vunpack.c.h.b16 %v63
  %v484 = vunpack.c.l.b16 %v64
  %v485 = vunpack.c.h.b16 %v64
  %v486 = vunpack.c.l.b16 %v65
  %v487 = vunpack.c.h.b16 %v65
  %v488 = vunpack.c.l.b16 %v66
  %v489 = vunpack.c.h.b16 %v66
  %v490 = vunpack.c.l.b16 %v67
  %v491 = vunpack.c.h.b16 %v67
  %v492 = vunpack.c.l.b16 %v68
  %v493 = vunpack.c.h.b16 %v68
  %v494 = vunpack.c.l.b16 %v69
  %v495 = vunpack.c.h.b16 %v69
  %v496 = vunpack.c.l.b16 %v70
  %v497 = vunpack.c.h.b16 %v70
  %v498 = vunpack.c.l.b16 %v71
  %v499 = vunpack.c.h.b16 %v71
  %v500 = vunpack.c.l.b16 %v72
  %v501 = vunpack.c.h.b16 %v72
  %v502 = vunpack.c.l.b16 %v73
  %v503 = vunpack.c.h.b16 %v73
  %v504 = vunpack.c.l.b16 %v74
  %v505 = vunpack.c.h.b16 %v74
  %v506 = vunpack.c.l.b16 %v75
  %v507 = vunpack.c.h.b16 %v75
  %v508 = vunpack.c.l.b16 %v76
  %v509 = vunpack.c.h.b16 %v76
  %v510 = vunpack.c.l.b16 %v77
  %v511 = vunpack.c.h.b16 %v77
  %v512 = vunpack.c.l.b16 %v78
  %v513 = vunpack.c.h.b16 %v78
  %v514 = vunpack.c.l.b16 %v79
  %v515 = vunpack.c.h.b16 %v79
  %v516 = vunpack.c.l.b16 %v80
  %v517 = vunpack.c.h.b16 %v80
  %v518 = vunpack.c.l.b16 %v81
  %v519 = vunpack.c.h.b16 %v81
  %v520 = vunpack.c.l.b16 %v82
  %v521 = vunpack.c.h.b16 %v82
  %v522 = vunpack.c.l.b16 %v83
  %v523 = vunpack.c.h.b16 %v83
  %v524 = vunpack.c.l.b16 %v84
  %v525 = vunpack.c.h.b16 %v84
  %v526 = vunpack.c.l.b16 %v85
  %v527 = vunpack.c.h.b16 %v85
  %v528 = vunpack.c.l.b16 %v86
  %v529 = vunpack.c.h.b16 %v86
  %v530 = vunpack.c.l.b16 %v87
  %v531 = vunpack.c.h.b16 %v87
  %v532 = vunpack.c.l.b16 %v88
  %v533 = vunpack.c.h.b16 %v88
  %v534 = vunpack.c.l.b16 %v89
  %v535 = vunpack.c.h.b16 %v89
  %v536 = vunpack.c.l.b16 %v90
  %v537 = vunpack.c.h.b16 %v90
  %v538 = vunpack.c.l.b16 %v91
  %v539 = vunpack.c.h.b16 %v91
  %v540 = vunpack.c.l.b16 %v92
  %v541 = vunpack.c.h.b16 %v92
  %v542 = vunpack.c.l.b16 %v93
  %v543 = vunpack.c.h.b16 %v93
  %v544 = vunpack.c.l.b16 %v94
  %v545 = vunpack.c.h.b16 %v94
  %v546 = vunpack.c.l.b16 %v95
  %v547 = vunpack.c.h.b16 %v95
  %v548 = vunpack.c.l.b16 %v96
  %v549 = vunpack.c.h.b16 %v96
  %v550 = vunpack.c.l.b16 %v97
  %v551 = vunpack.c.h.b16 %v97
  %v552 = vunpack.c.l.b16 %v98
  %v553 = vunpack.c.h.b16 %v98
  %v554 = vunpack.c.l.b16 %v99
  %v555 = vunpack.c.h.b16 %v99
  %v556 = vunpack.c.l.b16 %v100
  %v557 = vunpack.c.h.b16 %v100
  %v558 = vunpack.c.l.b16 %v101
  %v559 = vunpack.c.h.b16 %v101
  %v560 = vunpack.c.l.b16 %v102
  %v561 = vunpack.c.h.b16 %v102
  %v562 = vunpack.c.l.b16 %v103
  %v563 = vunpack.c.h.b16 %v103
  %v564 = vunpack.c.l.b16 %v104
  %v565 = vunpack.c.h.b16 %v104
  %v566 = vunpack.c.l.b16 %v105
  %v567 = vunpack.c.h.b16 %v105
  %v568 = vunpack.c.l.b16 %v106
  %v569 = vunpack.c.h.b16 %v106
  %v570 = vunpack.c.l.b16 %v107
  %v571 = vunpack.c.h.b16 %v107
  %v572 = vunpack.c.l.b16 %v108
  %v573 = vunpack.c.h.b16 %v108
  %v574 = vunpack.c.l.b16 %v109
  %v575 = vunpack.c.h.b16 %v109
  %v576 = vunpack.c.l.b16 %v110
  %v577 = vunpack.c.h.b16 %v110
  %v578 = vunpack.c.l.b16 %v111
  %v579 = vunpack.c.h.b16 %v111
  %v580 = vunpack.c.l.b16 %v112
  %v581 = vunpack.c.h.b16 %v112
  %v582 = vunpack.c.l.b16 %v113
  %v583 = vunpack.c.h.b16 %v113
  %v584 = vunpack.c.l.b16 %v114
  %v585 = vunpack.c.h.b16 %v114
  %v586 = vunpack.c.l.b16 %v115
  %v587 = vunpack.c.h.b16 %v115
  %v588 = vunpack.c.l.b16 %v116
  %v589 = vunpack.c.h.b16 %v116
  %v590 = vunpack.c.l.b16 %v117
  %v591 = vunpack.c.h.b16 %v117
  %v592 = vunpack.c.l.b16 %v118
  %v593 = vunpack.c.h.b16 %v118
  %v594 = vunpack.c.l.b16 %v119
  %v595 = vunpack.c.h.b16 %v119
  %v596 = vunpack.c.l.b16 %v120
  %v597 = vunpack.c.h.b16 %v120
  %v598 = vunpack.c.l.b16 %v121
  %v599 = vunpack.c.h.b16 %v121
  %v600 = vunpack.c.l.b16 %v122
  %v601 = vunpack.c.h.b16 %v122
  %v602 = vunpack.c.l.b16 %v123
  %v603 = vunpack.c.h.b16 %v123
  %v604 = vunpack.c.l.b16 %v124
  %v605 = vunpack.c.h.b16 %v124
  %v606 = vunpack.c.l.b16 %v125
  %v607 = vunpack.c.h.b16 %v125
  %v608 = vunpack.c.l.b16 %v126
  %v609 = vunpack.c.h.b16 %v126
  %v610 = vunpack.c.l.b16 %v127
  %v611 = vunpack.c.h.b16 %v127
  %v612 = vunpack.c.l.b16 %v128
  %v613 = vunpack.c.h.b16 %v128
  %v614 = vunpack.c.l.b16 %v129
  %v615 = vunpack.c.h.b16 %v129
  %v616 = vunpack.c.l.b16 %v130
  %v617 = vunpack.c.h.b16 %v130
  %v618 = vunpack.c.l.b16 %v131
  %v619 = vunpack.c.h.b16 %v131
  %v620 = vunpack.c.l.b16 %v132
  %v621 = vunpack.c.h.b16 %v132
  %v622 = vunpack.c.l.b16 %v133
  %v623 = vunpack.c.h.b16 %v133
  %v624 = vunpack.c.l.b16 %v134
  %v625 = vunpack.c.h.b16 %v134
  %v626 = vunpack.c.l.b16 %v135
  %v627 = vunpack.c.h.b16 %v135
  %v628 = vunpack.c.l.b16 %v136
  %v629 = vunpack.c.h.b16 %v136
  %v630 = vunpack.c.l.b16 %v137
  %v631 = vunpack.c.h.b16 %v137
  %v632 = vunpack.c.l.b16 %v138
  %v633 = vunpack.c.h.b16 %v138
  %v634 = vunpack.c.l.b16 %v139
  %v635 = vunpack.c.h.b16 %v139
  %v636 = vunpack.c.l.b16 %v140
  %v637 = vunpack.c.h.b16 %v140
  %v638 = vunpack.c.l.b16 %v141
  %v639 = vunpack.c.h.b16 %v141
  %v640 = vunpack.c.l.b16 %v142
  %v641 = vunpack.c.h.b16 %v142
  %v642 = vunpack.c.l.b16 %v143
  %v643 = vunpack.c.h.b16 %v143
  %v644 = vunpack.c.l.b16 %v144
  %v645 = vunpack.c.h.b16 %v144
  %v646 = vunpack.c.l.b16 %v145
  %v647 = vunpack.c.h.b16 %v145
  %v648 = vunpack.c.l.b16 %v146
  %v649 = vunpack.c.h.b16 %v146
  %v650 = vunpack.c.l.b16 %v147
  %v651 = vunpack.c.h.b16 %v147
  %v652 = vunpack.c.l.b16 %v148
  %v653 = vunpack.c.h.b16 %v148
  %v654 = vunpack.c.l.b16 %v149
  %v655 = vunpack.c.h.b16 %v149
  %v656 = vunpack.c.l.b16 %v150
  %v657 = vunpack.c.h.b16 %v150
  %v658 = vunpack.c.l.b16 %v151
  %v659 = vunpack.c.h.b16 %v151
  %v660 = vunpack.c.l.b16 %v152
  %v661 = vunpack.c.h.b16 %v152
  %v662 = vunpack.c.l.b16 %v153
  %v663 = vunpack.c.h.b16 %v153
  %v664 = vunpack.c.l.b16 %v154
  %v665 = vunpack.c.h.b16 %v154
  %v666 = vunpack.c.l.b16 %v155
  %v667 = vunpack.c.h.b16 %v155
  %v668 = vpack.c.b16 %v480, %v476
  %v669 = vpack.c.b16 %v481, %v477
  %v670 = vpack.c.b16 %v482, %v478
  %v671 = vpack.c.b16 %v483, %v479
  %v672 = vpack.c.b16 %v488, %v484
  %v673 = vpack.c.b16 %v489, %v485
  %v674 = vpack.c.b16 %v490, %v486
  %v675 = vpack.c.b16 %v491, %v487
  %v676 = vpack.c.b16 %v496, %v492
  %v677 = vpack.c.b16 %v497, %v493
  %v678 = vpack.c.b16 %v498, %v494
  %v679 = vpack.c.b16 %v499, %v495
  %v680 = vpack.c.b16 %v504, %v500
  %v681 = vpack.c.b16 %v505, %v501
  %v682 = vpack.c.b16 %v506, %v502
  %v683 = vpack.c.b16 %v507, %v503
  %v684 = vpack.c.b16 %v512, %v508
  %v685 = vpack.c.b16 %v513, %v509
  %v686 = vpack.c.b16 %v514, %v510
  %v687 = vpack.c.b16 %v515, %v511
  %v688 = vpack.c.b16 %v520, %v516
  %v689 = vpack.c.b16 %v521, %v517
  %v690 = vpack.c.b16 %v522, %v518
  %v691 = vpack.c.b16 %v523, %v519
  %v692 = vpack.c.b16 %v528, %v524
  %v693 = vpack.c.b16 %v529, %v525
  %v694 = vpack.c.b16 %v530, %v526
  %v695 = vpack.c.b16 %v531, %v527
  %v696 = vpack.c.b16 %v536, %v532
  %v697 = vpack.c.b16 %v537, %v533
  %v698 = vpack.c.b16 %v538, %v534
  %v699 = vpack.c.b16 %v539, %v535
  %v700 = vpack.c.b16 %v544, %v540
  %v701 = vpack.c.b16 %v545, %v541
  %v702 = vpack.c.b16 %v546, %v542
  %v703 = vpack.c.b16 %v547, %v543
  %v704 = vpack.c.b16 %v552, %v548
  %v705 = vpack.c.b16 %v553, %v549
  %v706 = vpack.c.b16 %v554, %v550
  %v707 = vpack.c.b16 %v555, %v551
  %v708 = vpack.c.b16 %v560, %v556
  %v709 = vpack.c.b16 %v561, %v557
  %v710 = vpack.c.b16 %v562, %v558
  %v711 = vpack.c.b16 %v563, %v559
  %v712 = vpack.c.b16 %v568, %v564
  %v713 = vpack.c.b16 %v569, %v565
  %v714 = vpack.c.b16 %v570, %v566
  %v715 = vpack.c.b16 %v571, %v567
  %v716 = vpack.c.b16 %v576, %v572
  %v717 = vpack.c.b16 %v577, %v573
  %v718 = vpack.c.b16 %v578, %v574
  %v719 = vpack.c.b16 %v579, %v575
  %v720 = vpack.c.b16 %v584, %v580
  %v721 = vpack.c.b16 %v585, %v581
  %v722 = vpack.c.b16 %v586, %v582
  %v723 = vpack.c.b16 %v587, %v583
  %v724 = vpack.c.b16 %v592, %v588
  %v725 = vpack.c.b16 %v593, %v589
  %v726 = vpack.c.b16 %v594, %v590
  %v727 = vpack.c.b16 %v595, %v591
  %v728 = vpack.c.b16 %v600, %v596
  %v729 = vpack.c.b16 %v601, %v597
  %v730 = vpack.c.b16 %v602, %v598
  %v731 = vpack.c.b16 %v603, %v599
  %v732 = vpack.c.b16 %v608, %v604
  %v733 = vpack.c.b16 %v609, %v605
  %v734 = vpack.c.b16 %v610, %v606
  %v735 = vpack.c.b16 %v611, %v607
  %v736 = vpack.c.b16 %v616, %v612
  %v737 = vpack.c.b16 %v617, %v613
  %v738 = vpack.c.b16 %v618, %v614
  %v739 = vpack.c.b16 %v619, %v615
  %v740 = vpack.c.b16 %v624, %v620
  %v741 = vpack.c.b16 %v625, %v621
  %v742 = vpack.c.b16 %v626, %v622
  %v743 = vpack.c.b16 %v627, %v623
  %v744 = vpack.c.b16 %v632, %v628
  %v745 = vpack.c.b16 %v633, %v629
  %v746 = vpack.c.b16 %v634, %v630
  %v747 = vpack.c.b16 %v635, %v631
  %v748 = vpack.c.b16 %v640, %v636
  %v749 = vpack.c.b16 %v641, %v637
  %v750 = vpack.c.b16 %v642, %v638
  %v751 = vpack.c.b16 %v643, %v639
  %v752 = vpack.c.b16 %v648, %v644
  %v753 = vpack.c.b16 %v649, %v645
  %v754 = vpack.c.b16 %v650, %v646
  %v755 = vpack.c.b16 %v651, %v647
  %v756 = vpack.c.b16 %v656, %v652
  %v757 = vpack.c.b16 %v657, %v653
  %v758 = vpack.c.b16 %v658, %v654
  %v759 = vpack.c.b16 %v659, %v655
  %v760 = vpack.c.b16 %v664, %v660
  %v761 = vpack.c.b16 %v665, %v661
  %v762 = vpack.c.b16 %v666, %v662
  %v763 = vpack.c.b16 %v667, %v663
  %860 = vmatpush.bf16.msra.mxu0 %v696
  %861 = vmatpush.bf16.msra.mxu0 %v692
  %862 = vmatpush.bf16.msra.mxu0 %v688
  %863 = vmatpush.bf16.msra.mxu0 %v684
  %864 = vmatpush.bf16.msra.mxu0 %v680
  %865 = vmatpush.bf16.msra.mxu0 %v676
  %866 = vmatpush.bf16.msra.mxu0 %v672
  %867 = vmatpush.bf16.msra.mxu0 %v668
  %868 = vmatmul.bf16.gmra.mxu0 %v332
  %v869 = vpop.f32.mrf.mxu0
  %v870 = vadd.f32 %v175, %v869
  %v871 = vpop.f32.mrf.mxu0
  %v872 = vadd.f32 %v180, %v871
  %873 = vmatmul.bf16.gmra.mxu0 %v335
  %v874 = vpop.f32.mrf.mxu0
  %v875 = vadd.f32 %v185, %v874
  %v876 = vpop.f32.mrf.mxu0
  %v877 = vadd.f32 %v190, %v876
  %878 = vmatmul.bf16.gmra.mxu0 %v338
  %v879 = vpop.f32.mrf.mxu0
  %v880 = vadd.f32 %v195, %v879
  %v881 = vpop.f32.mrf.mxu0
  %v882 = vadd.f32 %v200, %v881
  %883 = vmatmul.bf16.gmra.mxu0 %v341
  %v884 = vpop.f32.mrf.mxu0
  %v885 = vadd.f32 %v205, %v884
  %v886 = vpop.f32.mrf.mxu0
  %v887 = vadd.f32 %v210, %v886
  %888 = vmatmul.bf16.gmra.mxu0 %v344
  %v889 = vpop.f32.mrf.mxu0
  %v890 = vadd.f32 %v215, %v889
  %v891 = vpop.f32.mrf.mxu0
  %v892 = vadd.f32 %v220, %v891
  %893 = vmatmul.bf16.gmra.mxu0 %v347
  %v894 = vpop.f32.mrf.mxu0
  %v895 = vadd.f32 %v225, %v894
  %v896 = vpop.f32.mrf.mxu0
  %v897 = vadd.f32 %v230, %v896
  %898 = vmatmul.bf16.gmra.mxu0 %v350
  %v899 = vpop.f32.mrf.mxu0
  %v900 = vadd.f32 %v235, %v899
  %v901 = vpop.f32.mrf.mxu0
  %v902 = vadd.f32 %v240, %v901
  %903 = vmatmul.bf16.gmra.mxu0 %v353
  %v904 = vpop.f32.mrf.mxu0
  %v905 = vadd.f32 %v245, %v904
  %v906 = vpop.f32.mrf.mxu0
  %v907 = vadd.f32 %v250, %v906
  %908 = vdwg.mxu0
  %909 = vmatpush.bf16.msra.mxu0 %v728
  %910 = vmatpush.bf16.msra.mxu0 %v724
  %911 = vmatpush.bf16.msra.mxu0 %v720
  %912 = vmatpush.bf16.msra.mxu0 %v716
  %913 = vmatpush.bf16.msra.mxu0 %v712
  %914 = vmatpush.bf16.msra.mxu0 %v708
  %915 = vmatpush.bf16.msra.mxu0 %v704
  %916 = vmatpush.bf16.msra.mxu0 %v700
  %917 = vmatmul.bf16.gmra.mxu0 %v333
  %v918 = vpop.f32.mrf.mxu0
  %v919 = vadd.f32 %v870, %v918
  %v920 = vpop.f32.mrf.mxu0
  %v921 = vadd.f32 %v872, %v920
  %922 = vmatmul.bf16.gmra.mxu0 %v336
  %v923 = vpop.f32.mrf.mxu0
  %v924 = vadd.f32 %v875, %v923
  %v925 = vpop.f32.mrf.mxu0
  %v926 = vadd.f32 %v877, %v925
  %927 = vmatmul.bf16.gmra.mxu0 %v339
  %v928 = vpop.f32.mrf.mxu0
  %v929 = vadd.f32 %v880, %v928
  %v930 = vpop.f32.mrf.mxu0
  %v931 = vadd.f32 %v882, %v930
  %932 = vmatmul.bf16.gmra.mxu0 %v342
  %v933 = vpop.f32.mrf.mxu0
  %v934 = vadd.f32 %v885, %v933
  %v935 = vpop.f32.mrf.mxu0
  %v936 = vadd.f32 %v887, %v935
  %937 = vmatmul.bf16.gmra.mxu0 %v345
  %v938 = vpop.f32.mrf.mxu0
  %v939 = vadd.f32 %v890, %v938
  %v940 = vpop.f32.mrf.mxu0
  %v941 = vadd.f32 %v892, %v940
  %942 = vmatmul.bf16.gmra.mxu0 %v348
  %v943 = vpop.f32.mrf.mxu0
  %v944 = vadd.f32 %v895, %v943
  %v945 = vpop.f32.mrf.mxu0
  %v946 = vadd.f32 %v897, %v945
  %947 = vmatmul.bf16.gmra.mxu0 %v351
  %v948 = vpop.f32.mrf.mxu0
  %v949 = vadd.f32 %v900, %v948
  %v950 = vpop.f32.mrf.mxu0
  %v951 = vadd.f32 %v902, %v950
  %952 = vmatmul.bf16.gmra.mxu0 %v354
  %v953 = vpop.f32.mrf.mxu0
  %v954 = vadd.f32 %v905, %v953
  %v955 = vpop.f32.mrf.mxu0
  %v956 = vadd.f32 %v907, %v955
  %957 = vdwg.mxu0
  %958 = vmatpush.bf16.msra.mxu0 %v760
  %959 = vmatpush.bf16.msra.mxu0 %v756
  %960 = vmatpush.bf16.msra.mxu0 %v752
  %961 = vmatpush.bf16.msra.mxu0 %v748
  %962 = vmatpush.bf16.msra.mxu0 %v744
  %963 = vmatpush.bf16.msra.mxu0 %v740
  %964 = vmatpush.bf16.msra.mxu0 %v736
  %965 = vmatpush.bf16.msra.mxu0 %v732
  %966 = vmatmul.bf16.gmra.mxu0 %v334
  %v967 = vpop.f32.mrf.mxu0
  %v968 = vadd.f32 %v919, %v967
  %v969 = vpop.f32.mrf.mxu0
  %v970 = vadd.f32 %v921, %v969
  %971 = vmatmul.bf16.gmra.mxu0 %v337
  %v972 = vpop.f32.mrf.mxu0
  %v973 = vadd.f32 %v924, %v972
  %v974 = vpop.f32.mrf.mxu0
  %v975 = vadd.f32 %v926, %v974
  %976 = vmatmul.bf16.gmra.mxu0 %v340
  %v977 = vpop.f32.mrf.mxu0
  %v978 = vadd.f32 %v929, %v977
  %v979 = vpop.f32.mrf.mxu0
  %v980 = vadd.f32 %v931, %v979
  %981 = vmatmul.bf16.gmra.mxu0 %v343
  %v982 = vpop.f32.mrf.mxu0
  %v983 = vadd.f32 %v934, %v982
  %v984 = vpop.f32.mrf.mxu0
  %v985 = vadd.f32 %v936, %v984
  %986 = vmatmul.bf16.gmra.mxu0 %v346
  %v987 = vpop.f32.mrf.mxu0
  %v988 = vadd.f32 %v939, %v987
  %v989 = vpop.f32.mrf.mxu0
  %v990 = vadd.f32 %v941, %v989
  %991 = vmatmul.bf16.gmra.mxu0 %v349
  %v992 = vpop.f32.mrf.mxu0
  %v993 = vadd.f32 %v944, %v992
  %v994 = vpop.f32.mrf.mxu0
  %v995 = vadd.f32 %v946, %v994
  %996 = vmatmul.bf16.gmra.mxu0 %v352
  %v997 = vpop.f32.mrf.mxu0
  %v998 = vadd.f32 %v949, %v997
  %v999 = vpop.f32.mrf.mxu0
  %v1000 = vadd.f32 %v951, %v999
  %1001 = vmatmul.bf16.gmra.mxu0 %v355
  %v1002 = vpop.f32.mrf.mxu0
  %v1003 = vadd.f32 %v954, %v1002
  %v1004 = vpop.f32.mrf.mxu0
  %v1005 = vadd.f32 %v956, %v1004
  %1006 = vdwg.mxu0
  %1007 = vmatpush.bf16.msra.mxu0 %v697
  %1008 = vmatpush.bf16.msra.mxu0 %v693
  %1009 = vmatpush.bf16.msra.mxu0 %v689
  %1010 = vmatpush.bf16.msra.mxu0 %v685
  %1011 = vmatpush.bf16.msra.mxu0 %v681
  %1012 = vmatpush.bf16.msra.mxu0 %v677
  %1013 = vmatpush.bf16.msra.mxu0 %v673
  %1014 = vmatpush.bf16.msra.mxu0 %v669
  %1015 = vmatmul.bf16.gmra.mxu0 %v332
  %v1016 = vpop.f32.mrf.mxu0
  %v1017 = vadd.f32 %v175, %v1016
  %v1018 = vpop.f32.mrf.mxu0
  %v1019 = vadd.f32 %v180, %v1018
  %1020 = vmatmul.bf16.gmra.mxu0 %v335
  %v1021 = vpop.f32.mrf.mxu0
  %v1022 = vadd.f32 %v185, %v1021
  %v1023 = vpop.f32.mrf.mxu0
  %v1024 = vadd.f32 %v190, %v1023
  %1025 = vmatmul.bf16.gmra.mxu0 %v338
  %v1026 = vpop.f32.mrf.mxu0
  %v1027 = vadd.f32 %v195, %v1026
  %v1028 = vpop.f32.mrf.mxu0
  %v1029 = vadd.f32 %v200, %v1028
  %1030 = vmatmul.bf16.gmra.mxu0 %v341
  %v1031 = vpop.f32.mrf.mxu0
  %v1032 = vadd.f32 %v205, %v1031
  %v1033 = vpop.f32.mrf.mxu0
  %v1034 = vadd.f32 %v210, %v1033
  %1035 = vmatmul.bf16.gmra.mxu0 %v344
  %v1036 = vpop.f32.mrf.mxu0
  %v1037 = vadd.f32 %v215, %v1036
  %v1038 = vpop.f32.mrf.mxu0
  %v1039 = vadd.f32 %v220, %v1038
  %1040 = vmatmul.bf16.gmra.mxu0 %v347
  %v1041 = vpop.f32.mrf.mxu0
  %v1042 = vadd.f32 %v225, %v1041
  %v1043 = vpop.f32.mrf.mxu0
  %v1044 = vadd.f32 %v230, %v1043
  %1045 = vmatmul.bf16.gmra.mxu0 %v350
  %v1046 = vpop.f32.mrf.mxu0
  %v1047 = vadd.f32 %v235, %v1046
  %v1048 = vpop.f32.mrf.mxu0
  %v1049 = vadd.f32 %v240, %v1048
  %1050 = vmatmul.bf16.gmra.mxu0 %v353
  %v1051 = vpop.f32.mrf.mxu0
  %v1052 = vadd.f32 %v245, %v1051
  %v1053 = vpop.f32.mrf.mxu0
  %v1054 = vadd.f32 %v250, %v1053
  %1055 = vdwg.mxu0
  %1056 = vmatpush.bf16.msra.mxu0 %v729
  %1057 = vmatpush.bf16.msra.mxu0 %v725
  %1058 = vmatpush.bf16.msra.mxu0 %v721
  %1059 = vmatpush.bf16.msra.mxu0 %v717
  %1060 = vmatpush.bf16.msra.mxu0 %v713
  %1061 = vmatpush.bf16.msra.mxu0 %v709
  %1062 = vmatpush.bf16.msra.mxu0 %v705
  %1063 = vmatpush.bf16.msra.mxu0 %v701
  %1064 = vmatmul.bf16.gmra.mxu0 %v333
  %v1065 = vpop.f32.mrf.mxu0
  %v1066 = vadd.f32 %v1017, %v1065
  %v1067 = vpop.f32.mrf.mxu0
  %v1068 = vadd.f32 %v1019, %v1067
  %1069 = vmatmul.bf16.gmra.mxu0 %v336
  %v1070 = vpop.f32.mrf.mxu0
  %v1071 = vadd.f32 %v1022, %v1070
  %v1072 = vpop.f32.mrf.mxu0
  %v1073 = vadd.f32 %v1024, %v1072
  %1074 = vmatmul.bf16.gmra.mxu0 %v339
  %v1075 = vpop.f32.mrf.mxu0
  %v1076 = vadd.f32 %v1027, %v1075
  %v1077 = vpop.f32.mrf.mxu0
  %v1078 = vadd.f32 %v1029, %v1077
  %1079 = vmatmul.bf16.gmra.mxu0 %v342
  %v1080 = vpop.f32.mrf.mxu0
  %v1081 = vadd.f32 %v1032, %v1080
  %v1082 = vpop.f32.mrf.mxu0
  %v1083 = vadd.f32 %v1034, %v1082
  %1084 = vmatmul.bf16.gmra.mxu0 %v345
  %v1085 = vpop.f32.mrf.mxu0
  %v1086 = vadd.f32 %v1037, %v1085
  %v1087 = vpop.f32.mrf.mxu0
  %v1088 = vadd.f32 %v1039, %v1087
  %1089 = vmatmul.bf16.gmra.mxu0 %v348
  %v1090 = vpop.f32.mrf.mxu0
  %v1091 = vadd.f32 %v1042, %v1090
  %v1092 = vpop.f32.mrf.mxu0
  %v1093 = vadd.f32 %v1044, %v1092
  %1094 = vmatmul.bf16.gmra.mxu0 %v351
  %v1095 = vpop.f32.mrf.mxu0
  %v1096 = vadd.f32 %v1047, %v1095
  %v1097 = vpop.f32.mrf.mxu0
  %v1098 = vadd.f32 %v1049, %v1097
  %1099 = vmatmul.bf16.gmra.mxu0 %v354
  %v1100 = vpop.f32.mrf.mxu0
  %v1101 = vadd.f32 %v1052, %v1100
  %v1102 = vpop.f32.mrf.mxu0
  %v1103 = vadd.f32 %v1054, %v1102
  %1104 = vdwg.mxu0
  %1105 = vmatpush.bf16.msra.mxu0 %v761
  %1106 = vmatpush.bf16.msra.mxu0 %v757
  %1107 = vmatpush.bf16.msra.mxu0 %v753
  %1108 = vmatpush.bf16.msra.mxu0 %v749
  %1109 = vmatpush.bf16.msra.mxu0 %v745
  %1110 = vmatpush.bf16.msra.mxu0 %v741
  %1111 = vmatpush.bf16.msra.mxu0 %v737
  %1112 = vmatpush.bf16.msra.mxu0 %v733
  %1113 = vmatmul.bf16.gmra.mxu0 %v334
  %v1114 = vpop.f32.mrf.mxu0
  %v1115 = vadd.f32 %v1066, %v1114
  %v1116 = vpop.f32.mrf.mxu0
  %v1117 = vadd.f32 %v1068, %v1116
  %1118 = vmatmul.bf16.gmra.mxu0 %v337
  %v1119 = vpop.f32.mrf.mxu0
  %v1120 = vadd.f32 %v1071, %v1119
  %v1121 = vpop.f32.mrf.mxu0
  %v1122 = vadd.f32 %v1073, %v1121
  %1123 = vmatmul.bf16.gmra.mxu0 %v340
  %v1124 = vpop.f32.mrf.mxu0
  %v1125 = vadd.f32 %v1076, %v1124
  %v1126 = vpop.f32.mrf.mxu0
  %v1127 = vadd.f32 %v1078, %v1126
  %1128 = vmatmul.bf16.gmra.mxu0 %v343
  %v1129 = vpop.f32.mrf.mxu0
  %v1130 = vadd.f32 %v1081, %v1129
  %v1131 = vpop.f32.mrf.mxu0
  %v1132 = vadd.f32 %v1083, %v1131
  %1133 = vmatmul.bf16.gmra.mxu0 %v346
  %v1134 = vpop.f32.mrf.mxu0
  %v1135 = vadd.f32 %v1086, %v1134
  %v1136 = vpop.f32.mrf.mxu0
  %v1137 = vadd.f32 %v1088, %v1136
  %1138 = vmatmul.bf16.gmra.mxu0 %v349
  %v1139 = vpop.f32.mrf.mxu0
  %v1140 = vadd.f32 %v1091, %v1139
  %v1141 = vpop.f32.mrf.mxu0
  %v1142 = vadd.f32 %v1093, %v1141
  %1143 = vmatmul.bf16.gmra.mxu0 %v352
  %v1144 = vpop.f32.mrf.mxu0
  %v1145 = vadd.f32 %v1096, %v1144
  %v1146 = vpop.f32.mrf.mxu0
  %v1147 = vadd.f32 %v1098, %v1146
  %1148 = vmatmul.bf16.gmra.mxu0 %v355
  %v1149 = vpop.f32.mrf.mxu0
  %v1150 = vadd.f32 %v1101, %v1149
  %v1151 = vpop.f32.mrf.mxu0
  %v1152 = vadd.f32 %v1103, %v1151
  %1153 = vdwg.mxu0
  %1154 = vmatpush.bf16.msra.mxu0 %v698
  %1155 = vmatpush.bf16.msra.mxu0 %v694
  %1156 = vmatpush.bf16.msra.mxu0 %v690
  %1157 = vmatpush.bf16.msra.mxu0 %v686
  %1158 = vmatpush.bf16.msra.mxu0 %v682
  %1159 = vmatpush.bf16.msra.mxu0 %v678
  %1160 = vmatpush.bf16.msra.mxu0 %v674
  %1161 = vmatpush.bf16.msra.mxu0 %v670
  %1162 = vmatmul.bf16.gmra.mxu0 %v332
  %v1163 = vpop.f32.mrf.mxu0
  %v1164 = vadd.f32 %v175, %v1163
  %v1165 = vpop.f32.mrf.mxu0
  %v1166 = vadd.f32 %v180, %v1165
  %1167 = vmatmul.bf16.gmra.mxu0 %v335
  %v1168 = vpop.f32.mrf.mxu0
  %v1169 = vadd.f32 %v185, %v1168
  %v1170 = vpop.f32.mrf.mxu0
  %v1171 = vadd.f32 %v190, %v1170
  %1172 = vmatmul.bf16.gmra.mxu0 %v338
  %v1173 = vpop.f32.mrf.mxu0
  %v1174 = vadd.f32 %v195, %v1173
  %v1175 = vpop.f32.mrf.mxu0
  %v1176 = vadd.f32 %v200, %v1175
  %1177 = vmatmul.bf16.gmra.mxu0 %v341
  %v1178 = vpop.f32.mrf.mxu0
  %v1179 = vadd.f32 %v205, %v1178
  %v1180 = vpop.f32.mrf.mxu0
  %v1181 = vadd.f32 %v210, %v1180
  %1182 = vmatmul.bf16.gmra.mxu0 %v344
  %v1183 = vpop.f32.mrf.mxu0
  %v1184 = vadd.f32 %v215, %v1183
  %v1185 = vpop.f32.mrf.mxu0
  %v1186 = vadd.f32 %v220, %v1185
  %1187 = vmatmul.bf16.gmra.mxu0 %v347
  %v1188 = vpop.f32.mrf.mxu0
  %v1189 = vadd.f32 %v225, %v1188
  %v1190 = vpop.f32.mrf.mxu0
  %v1191 = vadd.f32 %v230, %v1190
  %1192 = vmatmul.bf16.gmra.mxu0 %v350
  %v1193 = vpop.f32.mrf.mxu0
  %v1194 = vadd.f32 %v235, %v1193
  %v1195 = vpop.f32.mrf.mxu0
  %v1196 = vadd.f32 %v240, %v1195
  %1197 = vmatmul.bf16.gmra.mxu0 %v353
  %v1198 = vpop.f32.mrf.mxu0
  %v1199 = vadd.f32 %v245, %v1198
  %v1200 = vpop.f32.mrf.mxu0
  %v1201 = vadd.f32 %v250, %v1200
  %1202 = vdwg.mxu0
  %1203 = vmatpush.bf16.msra.mxu0 %v730
  %1204 = vmatpush.bf16.msra.mxu0 %v726
  %1205 = vmatpush.bf16.msra.mxu0 %v722
  %1206 = vmatpush.bf16.msra.mxu0 %v718
  %1207 = vmatpush.bf16.msra.mxu0 %v714
  %1208 = vmatpush.bf16.msra.mxu0 %v710
  %1209 = vmatpush.bf16.msra.mxu0 %v706
  %1210 = vmatpush.bf16.msra.mxu0 %v702
  %1211 = vmatmul.bf16.gmra.mxu0 %v333
  %v1212 = vpop.f32.mrf.mxu0
  %v1213 = vadd.f32 %v1164, %v1212
  %v1214 = vpop.f32.mrf.mxu0
  %v1215 = vadd.f32 %v1166, %v1214
  %1216 = vmatmul.bf16.gmra.mxu0 %v336
  %v1217 = vpop.f32.mrf.mxu0
  %v1218 = vadd.f32 %v1169, %v1217
  %v1219 = vpop.f32.mrf.mxu0
  %v1220 = vadd.f32 %v1171, %v1219
  %1221 = vmatmul.bf16.gmra.mxu0 %v339
  %v1222 = vpop.f32.mrf.mxu0
  %v1223 = vadd.f32 %v1174, %v1222
  %v1224 = vpop.f32.mrf.mxu0
  %v1225 = vadd.f32 %v1176, %v1224
  %1226 = vmatmul.bf16.gmra.mxu0 %v342
  %v1227 = vpop.f32.mrf.mxu0
  %v1228 = vadd.f32 %v1179, %v1227
  %v1229 = vpop.f32.mrf.mxu0
  %v1230 = vadd.f32 %v1181, %v1229
  %1231 = vmatmul.bf16.gmra.mxu0 %v345
  %v1232 = vpop.f32.mrf.mxu0
  %v1233 = vadd.f32 %v1184, %v1232
  %v1234 = vpop.f32.mrf.mxu0
  %v1235 = vadd.f32 %v1186, %v1234
  %1236 = vmatmul.bf16.gmra.mxu0 %v348
  %v1237 = vpop.f32.mrf.mxu0
  %v1238 = vadd.f32 %v1189, %v1237
  %v1239 = vpop.f32.mrf.mxu0
  %v1240 = vadd.f32 %v1191, %v1239
  %1241 = vmatmul.bf16.gmra.mxu0 %v351
  %v1242 = vpop.f32.mrf.mxu0
  %v1243 = vadd.f32 %v1194, %v1242
  %v1244 = vpop.f32.mrf.mxu0
  %v1245 = vadd.f32 %v1196, %v1244
  %1246 = vmatmul.bf16.gmra.mxu0 %v354
  %v1247 = vpop.f32.mrf.mxu0
  %v1248 = vadd.f32 %v1199, %v1247
  %v1249 = vpop.f32.mrf.mxu0
  %v1250 = vadd.f32 %v1201, %v1249
  %1251 = vdwg.mxu0
  %1252 = vmatpush.bf16.msra.mxu0 %v762
  %1253 = vmatpush.bf16.msra.mxu0 %v758
  %1254 = vmatpush.bf16.msra.mxu0 %v754
  %1255 = vmatpush.bf16.msra.mxu0 %v750
  %1256 = vmatpush.bf16.msra.mxu0 %v746
  %1257 = vmatpush.bf16.msra.mxu0 %v742
  %1258 = vmatpush.bf16.msra.mxu0 %v738
  %1259 = vmatpush.bf16.msra.mxu0 %v734
  %1260 = vmatmul.bf16.gmra.mxu0 %v334
  %v1261 = vpop.f32.mrf.mxu0
  %v1262 = vadd.f32 %v1213, %v1261
  %v1263 = vpop.f32.mrf.mxu0
  %v1264 = vadd.f32 %v1215, %v1263
  %1265 = vmatmul.bf16.gmra.mxu0 %v337
  %v1266 = vpop.f32.mrf.mxu0
  %v1267 = vadd.f32 %v1218, %v1266
  %v1268 = vpop.f32.mrf.mxu0
  %v1269 = vadd.f32 %v1220, %v1268
  %1270 = vmatmul.bf16.gmra.mxu0 %v340
  %v1271 = vpop.f32.mrf.mxu0
  %v1272 = vadd.f32 %v1223, %v1271
  %v1273 = vpop.f32.mrf.mxu0
  %v1274 = vadd.f32 %v1225, %v1273
  %1275 = vmatmul.bf16.gmra.mxu0 %v343
  %v1276 = vpop.f32.mrf.mxu0
  %v1277 = vadd.f32 %v1228, %v1276
  %v1278 = vpop.f32.mrf.mxu0
  %v1279 = vadd.f32 %v1230, %v1278
  %1280 = vmatmul.bf16.gmra.mxu0 %v346
  %v1281 = vpop.f32.mrf.mxu0
  %v1282 = vadd.f32 %v1233, %v1281
  %v1283 = vpop.f32.mrf.mxu0
  %v1284 = vadd.f32 %v1235, %v1283
  %1285 = vmatmul.bf16.gmra.mxu0 %v349
  %v1286 = vpop.f32.mrf.mxu0
  %v1287 = vadd.f32 %v1238, %v1286
  %v1288 = vpop.f32.mrf.mxu0
  %v1289 = vadd.f32 %v1240, %v1288
  %1290 = vmatmul.bf16.gmra.mxu0 %v352
  %v1291 = vpop.f32.mrf.mxu0
  %v1292 = vadd.f32 %v1243, %v1291
  %v1293 = vpop.f32.mrf.mxu0
  %v1294 = vadd.f32 %v1245, %v1293
  %1295 = vmatmul.bf16.gmra.mxu0 %v355
  %v1296 = vpop.f32.mrf.mxu0
  %v1297 = vadd.f32 %v1248, %v1296
  %v1298 = vpop.f32.mrf.mxu0
  %v1299 = vadd.f32 %v1250, %v1298
  %1300 = vdwg.mxu0
  %1301 = vmatpush.bf16.msra.mxu0 %v699
  %1302 = vmatpush.bf16.msra.mxu0 %v695
  %1303 = vmatpush.bf16.msra.mxu0 %v691
  %1304 = vmatpush.bf16.msra.mxu0 %v687
  %1305 = vmatpush.bf16.msra.mxu0 %v683
  %1306 = vmatpush.bf16.msra.mxu0 %v679
  %1307 = vmatpush.bf16.msra.mxu0 %v675
  %1308 = vmatpush.bf16.msra.mxu0 %v671
  %1309 = vmatmul.bf16.gmra.mxu0 %v332
  %v1310 = vpop.f32.mrf.mxu0
  %v1311 = vadd.f32 %v175, %v1310
  %v1312 = vpop.f32.mrf.mxu0
  %v1313 = vadd.f32 %v180, %v1312
  %1314 = vmatmul.bf16.gmra.mxu0 %v335
  %v1315 = vpop.f32.mrf.mxu0
  %v1316 = vadd.f32 %v185, %v1315
  %v1317 = vpop.f32.mrf.mxu0
  %v1318 = vadd.f32 %v190, %v1317
  %1319 = vmatmul.bf16.gmra.mxu0 %v338
  %v1320 = vpop.f32.mrf.mxu0
  %v1321 = vadd.f32 %v195, %v1320
  %v1322 = vpop.f32.mrf.mxu0
  %v1323 = vadd.f32 %v200, %v1322
  %1324 = vmatmul.bf16.gmra.mxu0 %v341
  %v1325 = vpop.f32.mrf.mxu0
  %v1326 = vadd.f32 %v205, %v1325
  %v1327 = vpop.f32.mrf.mxu0
  %v1328 = vadd.f32 %v210, %v1327
  %1329 = vmatmul.bf16.gmra.mxu0 %v344
  %v1330 = vpop.f32.mrf.mxu0
  %v1331 = vadd.f32 %v215, %v1330
  %v1332 = vpop.f32.mrf.mxu0
  %v1333 = vadd.f32 %v220, %v1332
  %1334 = vmatmul.bf16.gmra.mxu0 %v347
  %v1335 = vpop.f32.mrf.mxu0
  %v1336 = vadd.f32 %v225, %v1335
  %v1337 = vpop.f32.mrf.mxu0
  %v1338 = vadd.f32 %v230, %v1337
  %1339 = vmatmul.bf16.gmra.mxu0 %v350
  %v1340 = vpop.f32.mrf.mxu0
  %v1341 = vadd.f32 %v235, %v1340
  %v1342 = vpop.f32.mrf.mxu0
  %v1343 = vadd.f32 %v240, %v1342
  %1344 = vmatmul.bf16.gmra.mxu0 %v353
  %v1345 = vpop.f32.mrf.mxu0
  %v1346 = vadd.f32 %v245, %v1345
  %v1347 = vpop.f32.mrf.mxu0
  %v1348 = vadd.f32 %v250, %v1347
  %1349 = vdwg.mxu0
  %1350 = vmatpush.bf16.msra.mxu0 %v731
  %1351 = vmatpush.bf16.msra.mxu0 %v727
  %1352 = vmatpush.bf16.msra.mxu0 %v723
  %1353 = vmatpush.bf16.msra.mxu0 %v719
  %1354 = vmatpush.bf16.msra.mxu0 %v715
  %1355 = vmatpush.bf16.msra.mxu0 %v711
  %1356 = vmatpush.bf16.msra.mxu0 %v707
  %1357 = vmatpush.bf16.msra.mxu0 %v703
  %1358 = vmatmul.bf16.gmra.mxu0 %v333
  %v1359 = vpop.f32.mrf.mxu0
  %v1360 = vadd.f32 %v1311, %v1359
  %v1361 = vpop.f32.mrf.mxu0
  %v1362 = vadd.f32 %v1313, %v1361
  %1363 = vmatmul.bf16.gmra.mxu0 %v336
  %v1364 = vpop.f32.mrf.mxu0
  %v1365 = vadd.f32 %v1316, %v1364
  %v1366 = vpop.f32.mrf.mxu0
  %v1367 = vadd.f32 %v1318, %v1366
  %1368 = vmatmul.bf16.gmra.mxu0 %v339
  %v1369 = vpop.f32.mrf.mxu0
  %v1370 = vadd.f32 %v1321, %v1369
  %v1371 = vpop.f32.mrf.mxu0
  %v1372 = vadd.f32 %v1323, %v1371
  %1373 = vmatmul.bf16.gmra.mxu0 %v342
  %v1374 = vpop.f32.mrf.mxu0
  %v1375 = vadd.f32 %v1326, %v1374
  %v1376 = vpop.f32.mrf.mxu0
  %v1377 = vadd.f32 %v1328, %v1376
  %1378 = vmatmul.bf16.gmra.mxu0 %v345
  %v1379 = vpop.f32.mrf.mxu0
  %v1380 = vadd.f32 %v1331, %v1379
  %v1381 = vpop.f32.mrf.mxu0
  %v1382 = vadd.f32 %v1333, %v1381
  %1383 = vmatmul.bf16.gmra.mxu0 %v348
  %v1384 = vpop.f32.mrf.mxu0
  %v1385 = vadd.f32 %v1336, %v1384
  %v1386 = vpop.f32.mrf.mxu0
  %v1387 = vadd.f32 %v1338, %v1386
  %1388 = vmatmul.bf16.gmra.mxu0 %v351
  %v1389 = vpop.f32.mrf.mxu0
  %v1390 = vadd.f32 %v1341, %v1389
  %v1391 = vpop.f32.mrf.mxu0
  %v1392 = vadd.f32 %v1343, %v1391
  %1393 = vmatmul.bf16.gmra.mxu0 %v354
  %v1394 = vpop.f32.mrf.mxu0
  %v1395 = vadd.f32 %v1346, %v1394
  %v1396 = vpop.f32.mrf.mxu0
  %v1397 = vadd.f32 %v1348, %v1396
  %1398 = vdwg.mxu0
  %1399 = vmatpush.bf16.msra.mxu0 %v763
  %1400 = vmatpush.bf16.msra.mxu0 %v759
  %1401 = vmatpush.bf16.msra.mxu0 %v755
  %1402 = vmatpush.bf16.msra.mxu0 %v751
  %1403 = vmatpush.bf16.msra.mxu0 %v747
  %1404 = vmatpush.bf16.msra.mxu0 %v743
  %1405 = vmatpush.bf16.msra.mxu0 %v739
  %1406 = vmatpush.bf16.msra.mxu0 %v735
  %1407 = vmatmul.bf16.gmra.mxu0 %v334
  %v1408 = vpop.f32.mrf.mxu0
  %v1409 = vadd.f32 %v1360, %v1408
  %v1410 = vpop.f32.mrf.mxu0
  %v1411 = vadd.f32 %v1362, %v1410
  %1412 = vmatmul.bf16.gmra.mxu0 %v337
  %v1413 = vpop.f32.mrf.mxu0
  %v1414 = vadd.f32 %v1365, %v1413
  %v1415 = vpop.f32.mrf.mxu0
  %v1416 = vadd.f32 %v1367, %v1415
  %1417 = vmatmul.bf16.gmra.mxu0 %v340
  %v1418 = vpop.f32.mrf.mxu0
  %v1419 = vadd.f32 %v1370, %v1418
  %v1420 = vpop.f32.mrf.mxu0
  %v1421 = vadd.f32 %v1372, %v1420
  %1422 = vmatmul.bf16.gmra.mxu0 %v343
  %v1423 = vpop.f32.mrf.mxu0
  %v1424 = vadd.f32 %v1375, %v1423
  %v1425 = vpop.f32.mrf.mxu0
  %v1426 = vadd.f32 %v1377, %v1425
  %1427 = vmatmul.bf16.gmra.mxu0 %v346
  %v1428 = vpop.f32.mrf.mxu0
  %v1429 = vadd.f32 %v1380, %v1428
  %v1430 = vpop.f32.mrf.mxu0
  %v1431 = vadd.f32 %v1382, %v1430
  %1432 = vmatmul.bf16.gmra.mxu0 %v349
  %v1433 = vpop.f32.mrf.mxu0
  %v1434 = vadd.f32 %v1385, %v1433
  %v1435 = vpop.f32.mrf.mxu0
  %v1436 = vadd.f32 %v1387, %v1435
  %1437 = vmatmul.bf16.gmra.mxu0 %v352
  %v1438 = vpop.f32.mrf.mxu0
  %v1439 = vadd.f32 %v1390, %v1438
  %v1440 = vpop.f32.mrf.mxu0
  %v1441 = vadd.f32 %v1392, %v1440
  %1442 = vmatmul.bf16.gmra.mxu0 %v355
  %v1443 = vpop.f32.mrf.mxu0
  %v1444 = vadd.f32 %v1395, %v1443
  %v1445 = vpop.f32.mrf.mxu0
  %v1446 = vadd.f32 %v1397, %v1445
  %1447 = vdwg.mxu0
  %v1448 = vld [vmem:[%s3] sm:$0xff]
  %v1449 = vld [vmem:[%s3 + $0x8] sm:$0xff]
  %v1450 = vld [vmem:[%s3 + $0x10] sm:$0xff]
  %v1451 = vld [vmem:[%s3 + $0x18] sm:$0xff]
  %v1452 = vld [vmem:[%s3 + $0x20] sm:$0xff]
  %v1453 = vld [vmem:[%s3 + $0x28] sm:$0xff]
  %v1454 = vld [vmem:[%s3 + $0x30] sm:$0xff]
  %v1455 = vld [vmem:[%s3 + $0x38] sm:$0xff]
  %v1456 = vld [vmem:[%s3 + $0x40] sm:$0xff]
  %v1457 = vld [vmem:[%s3 + $0x48] sm:$0xff]
  %v1458 = vld [vmem:[%s3 + $0x50] sm:$0xff]
  %v1459 = vld [vmem:[%s3 + $0x58] sm:$0xff]
  %v1460 = vld [vmem:[%s3 + $0x60] sm:$0xff]
  %v1461 = vld [vmem:[%s3 + $0x68] sm:$0xff]
  %v1462 = vld [vmem:[%s3 + $0x70] sm:$0xff]
  %v1463 = vld [vmem:[%s3 + $0x78] sm:$0xff]
  %v1464 = vld [vmem:[%s4] sm:$0xff]
  %v1465 = vld [vmem:[%s4 + $0x8] sm:$0xff]
  %v1466 = vld [vmem:[%s4 + $0x10] sm:$0xff]
  %v1467 = vld [vmem:[%s4 + $0x18] sm:$0xff]
  %v1468 = vld [vmem:[%s4 + $0x20] sm:$0xff]
  %v1469 = vld [vmem:[%s4 + $0x28] sm:$0xff]
  %v1470 = vld [vmem:[%s4 + $0x30] sm:$0xff]
  %v1471 = vld [vmem:[%s4 + $0x38] sm:$0xff]
  %v1472 = vld [vmem:[%s4 + $0x40] sm:$0xff]
  %v1473 = vld [vmem:[%s4 + $0x48] sm:$0xff]
  %v1474 = vld [vmem:[%s4 + $0x50] sm:$0xff]
  %v1475 = vld [vmem:[%s4 + $0x58] sm:$0xff]
  %v1476 = vld [vmem:[%s4 + $0x60] sm:$0xff]
  %v1477 = vld [vmem:[%s4 + $0x68] sm:$0xff]
  %v1478 = vld [vmem:[%s4 + $0x70] sm:$0xff]
  %v1479 = vld [vmem:[%s4 + $0x78] sm:$0xff]
  %v1480 = vmul.f32 %v1448, %v1464
  %v1481 = vmul.f32 %v1449, %v1465
  %v1482 = vmul.f32 %v1450, %v1466
  %v1483 = vmul.f32 %v1451, %v1467
  %v1484 = vmul.f32 %v1452, %v1468
  %v1485 = vmul.f32 %v1453, %v1469
  %v1486 = vmul.f32 %v1454, %v1470
  %v1487 = vmul.f32 %v1455, %v1471
  %v1488 = vmul.f32 %v1456, %v1472
  %v1489 = vmul.f32 %v1457, %v1473
  %v1490 = vmul.f32 %v1458, %v1474
  %v1491 = vmul.f32 %v1459, %v1475
  %v1492 = vmul.f32 %v1460, %v1476
  %v1493 = vmul.f32 %v1461, %v1477
  %v1494 = vmul.f32 %v1462, %v1478
  %v1495 = vmul.f32 %v1463, %v1479
  %v1496 = vadd.f32 %v968, %v1480
  %v1497 = vadd.f32 %v1115, %v1481
  %v1498 = vadd.f32 %v1262, %v1482
  %v1499 = vadd.f32 %v1409, %v1483
  %v1500 = vadd.f32 %v970, %v1484
  %v1501 = vadd.f32 %v1117, %v1485
  %v1502 = vadd.f32 %v1264, %v1486
  %v1503 = vadd.f32 %v1411, %v1487
  %v1504 = vadd.f32 %v973, %v1488
  %v1505 = vadd.f32 %v1120, %v1489
  %v1506 = vadd.f32 %v1267, %v1490
  %v1507 = vadd.f32 %v1414, %v1491
  %v1508 = vadd.f32 %v975, %v1492
  %v1509 = vadd.f32 %v1122, %v1493
  %v1510 = vadd.f32 %v1269, %v1494
  %v1511 = vadd.f32 %v1416, %v1495
  %v1512 = vxor.u32 %v1496, 2147483648
  %v1513 = vxor.u32 %v1497, 2147483648
  %v1514 = vxor.u32 %v1498, 2147483648
  %v1515 = vxor.u32 %v1499, 2147483648
  %v1516 = vxor.u32 %v1500, 2147483648
  %v1517 = vxor.u32 %v1501, 2147483648
  %v1518 = vxor.u32 %v1502, 2147483648
  %v1519 = vxor.u32 %v1503, 2147483648
  %v1520 = vxor.u32 %v1504, 2147483648
  %v1521 = vxor.u32 %v1505, 2147483648
  %v1522 = vxor.u32 %v1506, 2147483648
  %v1523 = vxor.u32 %v1507, 2147483648
  %v1524 = vxor.u32 %v1508, 2147483648
  %v1525 = vxor.u32 %v1509, 2147483648
  %v1526 = vxor.u32 %v1510, 2147483648
  %v1527 = vxor.u32 %v1511, 2147483648
  %v1528 = vmul.f32 %v1512, 1.442695
  %v1529 = vpow.pop %v1528
  %v1530 = vmul.f32 %v1513, 1.442695
  %v1531 = vpow.pop %v1530
  %v1532 = vmul.f32 %v1514, 1.442695
  %v1533 = vpow.pop %v1532
  %v1534 = vmul.f32 %v1515, 1.442695
  %v1535 = vpow.pop %v1534
  %v1536 = vmul.f32 %v1516, 1.442695
  %v1537 = vpow.pop %v1536
  %v1538 = vmul.f32 %v1517, 1.442695
  %v1539 = vpow.pop %v1538
  %v1540 = vmul.f32 %v1518, 1.442695
  %v1541 = vpow.pop %v1540
  %v1542 = vmul.f32 %v1519, 1.442695
  %v1543 = vpow.pop %v1542
  %v1544 = vmul.f32 %v1520, 1.442695
  %v1545 = vpow.pop %v1544
  %v1546 = vmul.f32 %v1521, 1.442695
  %v1547 = vpow.pop %v1546
  %v1548 = vmul.f32 %v1522, 1.442695
  %v1549 = vpow.pop %v1548
  %v1550 = vmul.f32 %v1523, 1.442695
  %v1551 = vpow.pop %v1550
  %v1552 = vmul.f32 %v1524, 1.442695
  %v1553 = vpow.pop %v1552
  %v1554 = vmul.f32 %v1525, 1.442695
  %v1555 = vpow.pop %v1554
  %v1556 = vmul.f32 %v1526, 1.442695
  %v1557 = vpow.pop %v1556
  %v1558 = vmul.f32 %v1527, 1.442695
  %v1559 = vpow.pop %v1558
  %v1560 = vadd.f32 %v1529, 1.0
  %v1561 = vadd.f32 %v1531, 1.0
  %v1562 = vadd.f32 %v1533, 1.0
  %v1563 = vadd.f32 %v1535, 1.0
  %v1564 = vadd.f32 %v1537, 1.0
  %v1565 = vadd.f32 %v1539, 1.0
  %v1566 = vadd.f32 %v1541, 1.0
  %v1567 = vadd.f32 %v1543, 1.0
  %v1568 = vadd.f32 %v1545, 1.0
  %v1569 = vadd.f32 %v1547, 1.0
  %v1570 = vadd.f32 %v1549, 1.0
  %v1571 = vadd.f32 %v1551, 1.0
  %v1572 = vadd.f32 %v1553, 1.0
  %v1573 = vadd.f32 %v1555, 1.0
  %v1574 = vadd.f32 %v1557, 1.0
  %v1575 = vadd.f32 %v1559, 1.0
  %v1576 = vrcp.pop %v1560
  %v1577 = vmul.f32 %v1560, %v1576
  %v1578 = vsub.f32 1.0, %v1577
  %v1579 = vmul.f32 %v1576, %v1578
  %v1580 = vadd.f32 %v1576, %v1579
  %vm1581 = vweird.f32 %v1560
  %vm1582 = vweird.f32 %v1576
  %vm1583 = vmor %vm1581, %vm1582
  %v1584 = vsel %vm1583, %v1576, %v1580
  %v1585 = vand.u32 2147483647, %v1560
  %vm1586 = vcmp.eq.f32.partialorder %v1585, 8.507059e+37
  %v1587 = vand.u32 %v1560, 2147483648
  %v1588 = vor.u32 1.1754944e-38, %v1587
  %v1589 = vsel %vm1586, %v1588, %v1584
  %v1590 = vmul.f32 1.0, %v1589
  %v1591 = vrcp.pop %v1561
  %v1592 = vmul.f32 %v1561, %v1591
  %v1593 = vsub.f32 1.0, %v1592
  %v1594 = vmul.f32 %v1591, %v1593
  %v1595 = vadd.f32 %v1591, %v1594
  %vm1596 = vweird.f32 %v1561
  %vm1597 = vweird.f32 %v1591
  %vm1598 = vmor %vm1596, %vm1597
  %v1599 = vsel %vm1598, %v1591, %v1595
  %v1600 = vand.u32 2147483647, %v1561
  %vm1601 = vcmp.eq.f32.partialorder %v1600, 8.507059e+37
  %v1602 = vand.u32 %v1561, 2147483648
  %v1603 = vor.u32 1.1754944e-38, %v1602
  %v1604 = vsel %vm1601, %v1603, %v1599
  %v1605 = vmul.f32 1.0, %v1604
  %v1606 = vrcp.pop %v1562
  %v1607 = vmul.f32 %v1562, %v1606
  %v1608 = vsub.f32 1.0, %v1607
  %v1609 = vmul.f32 %v1606, %v1608
  %v1610 = vadd.f32 %v1606, %v1609
  %vm1611 = vweird.f32 %v1562
  %vm1612 = vweird.f32 %v1606
  %vm1613 = vmor %vm1611, %vm1612
  %v1614 = vsel %vm1613, %v1606, %v1610
  %v1615 = vand.u32 2147483647, %v1562
  %vm1616 = vcmp.eq.f32.partialorder %v1615, 8.507059e+37
  %v1617 = vand.u32 %v1562, 2147483648
  %v1618 = vor.u32 1.1754944e-38, %v1617
  %v1619 = vsel %vm1616, %v1618, %v1614
  %v1620 = vmul.f32 1.0, %v1619
  %v1621 = vrcp.pop %v1563
  %v1622 = vmul.f32 %v1563, %v1621
  %v1623 = vsub.f32 1.0, %v1622
  %v1624 = vmul.f32 %v1621, %v1623
  %v1625 = vadd.f32 %v1621, %v1624
  %vm1626 = vweird.f32 %v1563
  %vm1627 = vweird.f32 %v1621
  %vm1628 = vmor %vm1626, %vm1627
  %v1629 = vsel %vm1628, %v1621, %v1625
  %v1630 = vand.u32 2147483647, %v1563
  %vm1631 = vcmp.eq.f32.partialorder %v1630, 8.507059e+37
  %v1632 = vand.u32 %v1563, 2147483648
  %v1633 = vor.u32 1.1754944e-38, %v1632
  %v1634 = vsel %vm1631, %v1633, %v1629
  %v1635 = vmul.f32 1.0, %v1634
  %v1636 = vrcp.pop %v1564
  %v1637 = vmul.f32 %v1564, %v1636
  %v1638 = vsub.f32 1.0, %v1637
  %v1639 = vmul.f32 %v1636, %v1638
  %v1640 = vadd.f32 %v1636, %v1639
  %vm1641 = vweird.f32 %v1564
  %vm1642 = vweird.f32 %v1636
  %vm1643 = vmor %vm1641, %vm1642
  %v1644 = vsel %vm1643, %v1636, %v1640
  %v1645 = vand.u32 2147483647, %v1564
  %vm1646 = vcmp.eq.f32.partialorder %v1645, 8.507059e+37
  %v1647 = vand.u32 %v1564, 2147483648
  %v1648 = vor.u32 1.1754944e-38, %v1647
  %v1649 = vsel %vm1646, %v1648, %v1644
  %v1650 = vmul.f32 1.0, %v1649
  %v1651 = vrcp.pop %v1565
  %v1652 = vmul.f32 %v1565, %v1651
  %v1653 = vsub.f32 1.0, %v1652
  %v1654 = vmul.f32 %v1651, %v1653
  %v1655 = vadd.f32 %v1651, %v1654
  %vm1656 = vweird.f32 %v1565
  %vm1657 = vweird.f32 %v1651
  %vm1658 = vmor %vm1656, %vm1657
  %v1659 = vsel %vm1658, %v1651, %v1655
  %v1660 = vand.u32 2147483647, %v1565
  %vm1661 = vcmp.eq.f32.partialorder %v1660, 8.507059e+37
  %v1662 = vand.u32 %v1565, 2147483648
  %v1663 = vor.u32 1.1754944e-38, %v1662
  %v1664 = vsel %vm1661, %v1663, %v1659
  %v1665 = vmul.f32 1.0, %v1664
  %v1666 = vrcp.pop %v1566
  %v1667 = vmul.f32 %v1566, %v1666
  %v1668 = vsub.f32 1.0, %v1667
  %v1669 = vmul.f32 %v1666, %v1668
  %v1670 = vadd.f32 %v1666, %v1669
  %vm1671 = vweird.f32 %v1566
  %vm1672 = vweird.f32 %v1666
  %vm1673 = vmor %vm1671, %vm1672
  %v1674 = vsel %vm1673, %v1666, %v1670
  %v1675 = vand.u32 2147483647, %v1566
  %vm1676 = vcmp.eq.f32.partialorder %v1675, 8.507059e+37
  %v1677 = vand.u32 %v1566, 2147483648
  %v1678 = vor.u32 1.1754944e-38, %v1677
  %v1679 = vsel %vm1676, %v1678, %v1674
  %v1680 = vmul.f32 1.0, %v1679
  %v1681 = vrcp.pop %v1567
  %v1682 = vmul.f32 %v1567, %v1681
  %v1683 = vsub.f32 1.0, %v1682
  %v1684 = vmul.f32 %v1681, %v1683
  %v1685 = vadd.f32 %v1681, %v1684
  %vm1686 = vweird.f32 %v1567
  %vm1687 = vweird.f32 %v1681
  %vm1688 = vmor %vm1686, %vm1687
  %v1689 = vsel %vm1688, %v1681, %v1685
  %v1690 = vand.u32 2147483647, %v1567
  %vm1691 = vcmp.eq.f32.partialorder %v1690, 8.507059e+37
  %v1692 = vand.u32 %v1567, 2147483648
  %v1693 = vor.u32 1.1754944e-38, %v1692
  %v1694 = vsel %vm1691, %v1693, %v1689
  %v1695 = vmul.f32 1.0, %v1694
  %v1696 = vrcp.pop %v1568
  %v1697 = vmul.f32 %v1568, %v1696
  %v1698 = vsub.f32 1.0, %v1697
  %v1699 = vmul.f32 %v1696, %v1698
  %v1700 = vadd.f32 %v1696, %v1699
  %vm1701 = vweird.f32 %v1568
  %vm1702 = vweird.f32 %v1696
  %vm1703 = vmor %vm1701, %vm1702
  %v1704 = vsel %vm1703, %v1696, %v1700
  %v1705 = vand.u32 2147483647, %v1568
  %vm1706 = vcmp.eq.f32.partialorder %v1705, 8.507059e+37
  %v1707 = vand.u32 %v1568, 2147483648
  %v1708 = vor.u32 1.1754944e-38, %v1707
  %v1709 = vsel %vm1706, %v1708, %v1704
  %v1710 = vmul.f32 1.0, %v1709
  %v1711 = vrcp.pop %v1569
  %v1712 = vmul.f32 %v1569, %v1711
  %v1713 = vsub.f32 1.0, %v1712
  %v1714 = vmul.f32 %v1711, %v1713
  %v1715 = vadd.f32 %v1711, %v1714
  %vm1716 = vweird.f32 %v1569
  %vm1717 = vweird.f32 %v1711
  %vm1718 = vmor %vm1716, %vm1717
  %v1719 = vsel %vm1718, %v1711, %v1715
  %v1720 = vand.u32 2147483647, %v1569
  %vm1721 = vcmp.eq.f32.partialorder %v1720, 8.507059e+37
  %v1722 = vand.u32 %v1569, 2147483648
  %v1723 = vor.u32 1.1754944e-38, %v1722
  %v1724 = vsel %vm1721, %v1723, %v1719
  %v1725 = vmul.f32 1.0, %v1724
  %v1726 = vrcp.pop %v1570
  %v1727 = vmul.f32 %v1570, %v1726
  %v1728 = vsub.f32 1.0, %v1727
  %v1729 = vmul.f32 %v1726, %v1728
  %v1730 = vadd.f32 %v1726, %v1729
  %vm1731 = vweird.f32 %v1570
  %vm1732 = vweird.f32 %v1726
  %vm1733 = vmor %vm1731, %vm1732
  %v1734 = vsel %vm1733, %v1726, %v1730
  %v1735 = vand.u32 2147483647, %v1570
  %vm1736 = vcmp.eq.f32.partialorder %v1735, 8.507059e+37
  %v1737 = vand.u32 %v1570, 2147483648
  %v1738 = vor.u32 1.1754944e-38, %v1737
  %v1739 = vsel %vm1736, %v1738, %v1734
  %v1740 = vmul.f32 1.0, %v1739
  %v1741 = vrcp.pop %v1571
  %v1742 = vmul.f32 %v1571, %v1741
  %v1743 = vsub.f32 1.0, %v1742
  %v1744 = vmul.f32 %v1741, %v1743
  %v1745 = vadd.f32 %v1741, %v1744
  %vm1746 = vweird.f32 %v1571
  %vm1747 = vweird.f32 %v1741
  %vm1748 = vmor %vm1746, %vm1747
  %v1749 = vsel %vm1748, %v1741, %v1745
  %v1750 = vand.u32 2147483647, %v1571
  %vm1751 = vcmp.eq.f32.partialorder %v1750, 8.507059e+37
  %v1752 = vand.u32 %v1571, 2147483648
  %v1753 = vor.u32 1.1754944e-38, %v1752
  %v1754 = vsel %vm1751, %v1753, %v1749
  %v1755 = vmul.f32 1.0, %v1754
  %v1756 = vrcp.pop %v1572
  %v1757 = vmul.f32 %v1572, %v1756
  %v1758 = vsub.f32 1.0, %v1757
  %v1759 = vmul.f32 %v1756, %v1758
  %v1760 = vadd.f32 %v1756, %v1759
  %vm1761 = vweird.f32 %v1572
  %vm1762 = vweird.f32 %v1756
  %vm1763 = vmor %vm1761, %vm1762
  %v1764 = vsel %vm1763, %v1756, %v1760
  %v1765 = vand.u32 2147483647, %v1572
  %vm1766 = vcmp.eq.f32.partialorder %v1765, 8.507059e+37
  %v1767 = vand.u32 %v1572, 2147483648
  %v1768 = vor.u32 1.1754944e-38, %v1767
  %v1769 = vsel %vm1766, %v1768, %v1764
  %v1770 = vmul.f32 1.0, %v1769
  %v1771 = vrcp.pop %v1573
  %v1772 = vmul.f32 %v1573, %v1771
  %v1773 = vsub.f32 1.0, %v1772
  %v1774 = vmul.f32 %v1771, %v1773
  %v1775 = vadd.f32 %v1771, %v1774
  %vm1776 = vweird.f32 %v1573
  %vm1777 = vweird.f32 %v1771
  %vm1778 = vmor %vm1776, %vm1777
  %v1779 = vsel %vm1778, %v1771, %v1775
  %v1780 = vand.u32 2147483647, %v1573
  %vm1781 = vcmp.eq.f32.partialorder %v1780, 8.507059e+37
  %v1782 = vand.u32 %v1573, 2147483648
  %v1783 = vor.u32 1.1754944e-38, %v1782
  %v1784 = vsel %vm1781, %v1783, %v1779
  %v1785 = vmul.f32 1.0, %v1784
  %v1786 = vrcp.pop %v1574
  %v1787 = vmul.f32 %v1574, %v1786
  %v1788 = vsub.f32 1.0, %v1787
  %v1789 = vmul.f32 %v1786, %v1788
  %v1790 = vadd.f32 %v1786, %v1789
  %vm1791 = vweird.f32 %v1574
  %vm1792 = vweird.f32 %v1786
  %vm1793 = vmor %vm1791, %vm1792
  %v1794 = vsel %vm1793, %v1786, %v1790
  %v1795 = vand.u32 2147483647, %v1574
  %vm1796 = vcmp.eq.f32.partialorder %v1795, 8.507059e+37
  %v1797 = vand.u32 %v1574, 2147483648
  %v1798 = vor.u32 1.1754944e-38, %v1797
  %v1799 = vsel %vm1796, %v1798, %v1794
  %v1800 = vmul.f32 1.0, %v1799
  %v1801 = vrcp.pop %v1575
  %v1802 = vmul.f32 %v1575, %v1801
  %v1803 = vsub.f32 1.0, %v1802
  %v1804 = vmul.f32 %v1801, %v1803
  %v1805 = vadd.f32 %v1801, %v1804
  %vm1806 = vweird.f32 %v1575
  %vm1807 = vweird.f32 %v1801
  %vm1808 = vmor %vm1806, %vm1807
  %v1809 = vsel %vm1808, %v1801, %v1805
  %v1810 = vand.u32 2147483647, %v1575
  %vm1811 = vcmp.eq.f32.partialorder %v1810, 8.507059e+37
  %v1812 = vand.u32 %v1575, 2147483648
  %v1813 = vor.u32 1.1754944e-38, %v1812
  %v1814 = vsel %vm1811, %v1813, %v1809
  %v1815 = vmul.f32 1.0, %v1814
  %v1816 = vld [vmem:[%s5] sm:$0xff]
  %v1817 = vld [vmem:[%s5 + $0x8] sm:$0xff]
  %v1818 = vld [vmem:[%s5 + $0x10] sm:$0xff]
  %v1819 = vld [vmem:[%s5 + $0x18] sm:$0xff]
  %v1820 = vld [vmem:[%s5 + $0x20] sm:$0xff]
  %v1821 = vld [vmem:[%s5 + $0x28] sm:$0xff]
  %v1822 = vld [vmem:[%s5 + $0x30] sm:$0xff]
  %v1823 = vld [vmem:[%s5 + $0x38] sm:$0xff]
  %v1824 = vld [vmem:[%s5 + $0x40] sm:$0xff]
  %v1825 = vld [vmem:[%s5 + $0x48] sm:$0xff]
  %v1826 = vld [vmem:[%s5 + $0x50] sm:$0xff]
  %v1827 = vld [vmem:[%s5 + $0x58] sm:$0xff]
  %v1828 = vld [vmem:[%s5 + $0x60] sm:$0xff]
  %v1829 = vld [vmem:[%s5 + $0x68] sm:$0xff]
  %v1830 = vld [vmem:[%s5 + $0x70] sm:$0xff]
  %v1831 = vld [vmem:[%s5 + $0x78] sm:$0xff]
  %v1832 = vmul.f32 %v1448, %v1816
  %v1833 = vmul.f32 %v1449, %v1817
  %v1834 = vmul.f32 %v1450, %v1818
  %v1835 = vmul.f32 %v1451, %v1819
  %v1836 = vmul.f32 %v1452, %v1820
  %v1837 = vmul.f32 %v1453, %v1821
  %v1838 = vmul.f32 %v1454, %v1822
  %v1839 = vmul.f32 %v1455, %v1823
  %v1840 = vmul.f32 %v1456, %v1824
  %v1841 = vmul.f32 %v1457, %v1825
  %v1842 = vmul.f32 %v1458, %v1826
  %v1843 = vmul.f32 %v1459, %v1827
  %v1844 = vmul.f32 %v1460, %v1828
  %v1845 = vmul.f32 %v1461, %v1829
  %v1846 = vmul.f32 %v1462, %v1830
  %v1847 = vmul.f32 %v1463, %v1831
  %v1848 = vadd.f32 %v978, %v1832
  %v1849 = vadd.f32 %v1125, %v1833
  %v1850 = vadd.f32 %v1272, %v1834
  %v1851 = vadd.f32 %v1419, %v1835
  %v1852 = vadd.f32 %v980, %v1836
  %v1853 = vadd.f32 %v1127, %v1837
  %v1854 = vadd.f32 %v1274, %v1838
  %v1855 = vadd.f32 %v1421, %v1839
  %v1856 = vadd.f32 %v983, %v1840
  %v1857 = vadd.f32 %v1130, %v1841
  %v1858 = vadd.f32 %v1277, %v1842
  %v1859 = vadd.f32 %v1424, %v1843
  %v1860 = vadd.f32 %v985, %v1844
  %v1861 = vadd.f32 %v1132, %v1845
  %v1862 = vadd.f32 %v1279, %v1846
  %v1863 = vadd.f32 %v1426, %v1847
  %v1864 = vxor.u32 %v1848, 2147483648
  %v1865 = vxor.u32 %v1849, 2147483648
  %v1866 = vxor.u32 %v1850, 2147483648
  %v1867 = vxor.u32 %v1851, 2147483648
  %v1868 = vxor.u32 %v1852, 2147483648
  %v1869 = vxor.u32 %v1853, 2147483648
  %v1870 = vxor.u32 %v1854, 2147483648
  %v1871 = vxor.u32 %v1855, 2147483648
  %v1872 = vxor.u32 %v1856, 2147483648
  %v1873 = vxor.u32 %v1857, 2147483648
  %v1874 = vxor.u32 %v1858, 2147483648
  %v1875 = vxor.u32 %v1859, 2147483648
  %v1876 = vxor.u32 %v1860, 2147483648
  %v1877 = vxor.u32 %v1861, 2147483648
  %v1878 = vxor.u32 %v1862, 2147483648
  %v1879 = vxor.u32 %v1863, 2147483648
  %v1880 = vmul.f32 %v1864, 1.442695
  %v1881 = vpow.pop %v1880
  %v1882 = vmul.f32 %v1865, 1.442695
  %v1883 = vpow.pop %v1882
  %v1884 = vmul.f32 %v1866, 1.442695
  %v1885 = vpow.pop %v1884
  %v1886 = vmul.f32 %v1867, 1.442695
  %v1887 = vpow.pop %v1886
  %v1888 = vmul.f32 %v1868, 1.442695
  %v1889 = vpow.pop %v1888
  %v1890 = vmul.f32 %v1869, 1.442695
  %v1891 = vpow.pop %v1890
  %v1892 = vmul.f32 %v1870, 1.442695
  %v1893 = vpow.pop %v1892
  %v1894 = vmul.f32 %v1871, 1.442695
  %v1895 = vpow.pop %v1894
  %v1896 = vmul.f32 %v1872, 1.442695
  %v1897 = vpow.pop %v1896
  %v1898 = vmul.f32 %v1873, 1.442695
  %v1899 = vpow.pop %v1898
  %v1900 = vmul.f32 %v1874, 1.442695
  %v1901 = vpow.pop %v1900
  %v1902 = vmul.f32 %v1875, 1.442695
  %v1903 = vpow.pop %v1902
  %v1904 = vmul.f32 %v1876, 1.442695
  %v1905 = vpow.pop %v1904
  %v1906 = vmul.f32 %v1877, 1.442695
  %v1907 = vpow.pop %v1906
  %v1908 = vmul.f32 %v1878, 1.442695
  %v1909 = vpow.pop %v1908
  %v1910 = vmul.f32 %v1879, 1.442695
  %v1911 = vpow.pop %v1910
  %v1912 = vadd.f32 %v1881, 1.0
  %v1913 = vadd.f32 %v1883, 1.0
  %v1914 = vadd.f32 %v1885, 1.0
  %v1915 = vadd.f32 %v1887, 1.0
  %v1916 = vadd.f32 %v1889, 1.0
  %v1917 = vadd.f32 %v1891, 1.0
  %v1918 = vadd.f32 %v1893, 1.0
  %v1919 = vadd.f32 %v1895, 1.0
  %v1920 = vadd.f32 %v1897, 1.0
  %v1921 = vadd.f32 %v1899, 1.0
  %v1922 = vadd.f32 %v1901, 1.0
  %v1923 = vadd.f32 %v1903, 1.0
  %v1924 = vadd.f32 %v1905, 1.0
  %v1925 = vadd.f32 %v1907, 1.0
  %v1926 = vadd.f32 %v1909, 1.0
  %v1927 = vadd.f32 %v1911, 1.0
  %v1928 = vrcp.pop %v1912
  %v1929 = vmul.f32 %v1912, %v1928
  %v1930 = vsub.f32 1.0, %v1929
  %v1931 = vmul.f32 %v1928, %v1930
  %v1932 = vadd.f32 %v1928, %v1931
  %vm1933 = vweird.f32 %v1912
  %vm1934 = vweird.f32 %v1928
  %vm1935 = vmor %vm1933, %vm1934
  %v1936 = vsel %vm1935, %v1928, %v1932
  %v1937 = vand.u32 2147483647, %v1912
  %vm1938 = vcmp.eq.f32.partialorder %v1937, 8.507059e+37
  %v1939 = vand.u32 %v1912, 2147483648
  %v1940 = vor.u32 1.1754944e-38, %v1939
  %v1941 = vsel %vm1938, %v1940, %v1936
  %v1942 = vmul.f32 1.0, %v1941
  %v1943 = vrcp.pop %v1913
  %v1944 = vmul.f32 %v1913, %v1943
  %v1945 = vsub.f32 1.0, %v1944
  %v1946 = vmul.f32 %v1943, %v1945
  %v1947 = vadd.f32 %v1943, %v1946
  %vm1948 = vweird.f32 %v1913
  %vm1949 = vweird.f32 %v1943
  %vm1950 = vmor %vm1948, %vm1949
  %v1951 = vsel %vm1950, %v1943, %v1947
  %v1952 = vand.u32 2147483647, %v1913
  %vm1953 = vcmp.eq.f32.partialorder %v1952, 8.507059e+37
  %v1954 = vand.u32 %v1913, 2147483648
  %v1955 = vor.u32 1.1754944e-38, %v1954
  %v1956 = vsel %vm1953, %v1955, %v1951
  %v1957 = vmul.f32 1.0, %v1956
  %v1958 = vrcp.pop %v1914
  %v1959 = vmul.f32 %v1914, %v1958
  %v1960 = vsub.f32 1.0, %v1959
  %v1961 = vmul.f32 %v1958, %v1960
  %v1962 = vadd.f32 %v1958, %v1961
  %vm1963 = vweird.f32 %v1914
  %vm1964 = vweird.f32 %v1958
  %vm1965 = vmor %vm1963, %vm1964
  %v1966 = vsel %vm1965, %v1958, %v1962
  %v1967 = vand.u32 2147483647, %v1914
  %vm1968 = vcmp.eq.f32.partialorder %v1967, 8.507059e+37
  %v1969 = vand.u32 %v1914, 2147483648
  %v1970 = vor.u32 1.1754944e-38, %v1969
  %v1971 = vsel %vm1968, %v1970, %v1966
  %v1972 = vmul.f32 1.0, %v1971
  %v1973 = vrcp.pop %v1915
  %v1974 = vmul.f32 %v1915, %v1973
  %v1975 = vsub.f32 1.0, %v1974
  %v1976 = vmul.f32 %v1973, %v1975
  %v1977 = vadd.f32 %v1973, %v1976
  %vm1978 = vweird.f32 %v1915
  %vm1979 = vweird.f32 %v1973
  %vm1980 = vmor %vm1978, %vm1979
  %v1981 = vsel %vm1980, %v1973, %v1977
  %v1982 = vand.u32 2147483647, %v1915
  %vm1983 = vcmp.eq.f32.partialorder %v1982, 8.507059e+37
  %v1984 = vand.u32 %v1915, 2147483648
  %v1985 = vor.u32 1.1754944e-38, %v1984
  %v1986 = vsel %vm1983, %v1985, %v1981
  %v1987 = vmul.f32 1.0, %v1986
  %v1988 = vrcp.pop %v1916
  %v1989 = vmul.f32 %v1916, %v1988
  %v1990 = vsub.f32 1.0, %v1989
  %v1991 = vmul.f32 %v1988, %v1990
  %v1992 = vadd.f32 %v1988, %v1991
  %vm1993 = vweird.f32 %v1916
  %vm1994 = vweird.f32 %v1988
  %vm1995 = vmor %vm1993, %vm1994
  %v1996 = vsel %vm1995, %v1988, %v1992
  %v1997 = vand.u32 2147483647, %v1916
  %vm1998 = vcmp.eq.f32.partialorder %v1997, 8.507059e+37
  %v1999 = vand.u32 %v1916, 2147483648
  %v2000 = vor.u32 1.1754944e-38, %v1999
  %v2001 = vsel %vm1998, %v2000, %v1996
  %v2002 = vmul.f32 1.0, %v2001
  %v2003 = vrcp.pop %v1917
  %v2004 = vmul.f32 %v1917, %v2003
  %v2005 = vsub.f32 1.0, %v2004
  %v2006 = vmul.f32 %v2003, %v2005
  %v2007 = vadd.f32 %v2003, %v2006
  %vm2008 = vweird.f32 %v1917
  %vm2009 = vweird.f32 %v2003
  %vm2010 = vmor %vm2008, %vm2009
  %v2011 = vsel %vm2010, %v2003, %v2007
  %v2012 = vand.u32 2147483647, %v1917
  %vm2013 = vcmp.eq.f32.partialorder %v2012, 8.507059e+37
  %v2014 = vand.u32 %v1917, 2147483648
  %v2015 = vor.u32 1.1754944e-38, %v2014
  %v2016 = vsel %vm2013, %v2015, %v2011
  %v2017 = vmul.f32 1.0, %v2016
  %v2018 = vrcp.pop %v1918
  %v2019 = vmul.f32 %v1918, %v2018
  %v2020 = vsub.f32 1.0, %v2019
  %v2021 = vmul.f32 %v2018, %v2020
  %v2022 = vadd.f32 %v2018, %v2021
  %vm2023 = vweird.f32 %v1918
  %vm2024 = vweird.f32 %v2018
  %vm2025 = vmor %vm2023, %vm2024
  %v2026 = vsel %vm2025, %v2018, %v2022
  %v2027 = vand.u32 2147483647, %v1918
  %vm2028 = vcmp.eq.f32.partialorder %v2027, 8.507059e+37
  %v2029 = vand.u32 %v1918, 2147483648
  %v2030 = vor.u32 1.1754944e-38, %v2029
  %v2031 = vsel %vm2028, %v2030, %v2026
  %v2032 = vmul.f32 1.0, %v2031
  %v2033 = vrcp.pop %v1919
  %v2034 = vmul.f32 %v1919, %v2033
  %v2035 = vsub.f32 1.0, %v2034
  %v2036 = vmul.f32 %v2033, %v2035
  %v2037 = vadd.f32 %v2033, %v2036
  %vm2038 = vweird.f32 %v1919
  %vm2039 = vweird.f32 %v2033
  %vm2040 = vmor %vm2038, %vm2039
  %v2041 = vsel %vm2040, %v2033, %v2037
  %v2042 = vand.u32 2147483647, %v1919
  %vm2043 = vcmp.eq.f32.partialorder %v2042, 8.507059e+37
  %v2044 = vand.u32 %v1919, 2147483648
  %v2045 = vor.u32 1.1754944e-38, %v2044
  %v2046 = vsel %vm2043, %v2045, %v2041
  %v2047 = vmul.f32 1.0, %v2046
  %v2048 = vrcp.pop %v1920
  %v2049 = vmul.f32 %v1920, %v2048
  %v2050 = vsub.f32 1.0, %v2049
  %v2051 = vmul.f32 %v2048, %v2050
  %v2052 = vadd.f32 %v2048, %v2051
  %vm2053 = vweird.f32 %v1920
  %vm2054 = vweird.f32 %v2048
  %vm2055 = vmor %vm2053, %vm2054
  %v2056 = vsel %vm2055, %v2048, %v2052
  %v2057 = vand.u32 2147483647, %v1920
  %vm2058 = vcmp.eq.f32.partialorder %v2057, 8.507059e+37
  %v2059 = vand.u32 %v1920, 2147483648
  %v2060 = vor.u32 1.1754944e-38, %v2059
  %v2061 = vsel %vm2058, %v2060, %v2056
  %v2062 = vmul.f32 1.0, %v2061
  %v2063 = vrcp.pop %v1921
  %v2064 = vmul.f32 %v1921, %v2063
  %v2065 = vsub.f32 1.0, %v2064
  %v2066 = vmul.f32 %v2063, %v2065
  %v2067 = vadd.f32 %v2063, %v2066
  %vm2068 = vweird.f32 %v1921
  %vm2069 = vweird.f32 %v2063
  %vm2070 = vmor %vm2068, %vm2069
  %v2071 = vsel %vm2070, %v2063, %v2067
  %v2072 = vand.u32 2147483647, %v1921
  %vm2073 = vcmp.eq.f32.partialorder %v2072, 8.507059e+37
  %v2074 = vand.u32 %v1921, 2147483648
  %v2075 = vor.u32 1.1754944e-38, %v2074
  %v2076 = vsel %vm2073, %v2075, %v2071
  %v2077 = vmul.f32 1.0, %v2076
  %v2078 = vrcp.pop %v1922
  %v2079 = vmul.f32 %v1922, %v2078
  %v2080 = vsub.f32 1.0, %v2079
  %v2081 = vmul.f32 %v2078, %v2080
  %v2082 = vadd.f32 %v2078, %v2081
  %vm2083 = vweird.f32 %v1922
  %vm2084 = vweird.f32 %v2078
  %vm2085 = vmor %vm2083, %vm2084
  %v2086 = vsel %vm2085, %v2078, %v2082
  %v2087 = vand.u32 2147483647, %v1922
  %vm2088 = vcmp.eq.f32.partialorder %v2087, 8.507059e+37
  %v2089 = vand.u32 %v1922, 2147483648
  %v2090 = vor.u32 1.1754944e-38, %v2089
  %v2091 = vsel %vm2088, %v2090, %v2086
  %v2092 = vmul.f32 1.0, %v2091
  %v2093 = vrcp.pop %v1923
  %v2094 = vmul.f32 %v1923, %v2093
  %v2095 = vsub.f32 1.0, %v2094
  %v2096 = vmul.f32 %v2093, %v2095
  %v2097 = vadd.f32 %v2093, %v2096
  %vm2098 = vweird.f32 %v1923
  %vm2099 = vweird.f32 %v2093
  %vm2100 = vmor %vm2098, %vm2099
  %v2101 = vsel %vm2100, %v2093, %v2097
  %v2102 = vand.u32 2147483647, %v1923
  %vm2103 = vcmp.eq.f32.partialorder %v2102, 8.507059e+37
  %v2104 = vand.u32 %v1923, 2147483648
  %v2105 = vor.u32 1.1754944e-38, %v2104
  %v2106 = vsel %vm2103, %v2105, %v2101
  %v2107 = vmul.f32 1.0, %v2106
  %v2108 = vrcp.pop %v1924
  %v2109 = vmul.f32 %v1924, %v2108
  %v2110 = vsub.f32 1.0, %v2109
  %v2111 = vmul.f32 %v2108, %v2110
  %v2112 = vadd.f32 %v2108, %v2111
  %vm2113 = vweird.f32 %v1924
  %vm2114 = vweird.f32 %v2108
  %vm2115 = vmor %vm2113, %vm2114
  %v2116 = vsel %vm2115, %v2108, %v2112
  %v2117 = vand.u32 2147483647, %v1924
  %vm2118 = vcmp.eq.f32.partialorder %v2117, 8.507059e+37
  %v2119 = vand.u32 %v1924, 2147483648
  %v2120 = vor.u32 1.1754944e-38, %v2119
  %v2121 = vsel %vm2118, %v2120, %v2116
  %v2122 = vmul.f32 1.0, %v2121
  %v2123 = vrcp.pop %v1925
  %v2124 = vmul.f32 %v1925, %v2123
  %v2125 = vsub.f32 1.0, %v2124
  %v2126 = vmul.f32 %v2123, %v2125
  %v2127 = vadd.f32 %v2123, %v2126
  %vm2128 = vweird.f32 %v1925
  %vm2129 = vweird.f32 %v2123
  %vm2130 = vmor %vm2128, %vm2129
  %v2131 = vsel %vm2130, %v2123, %v2127
  %v2132 = vand.u32 2147483647, %v1925
  %vm2133 = vcmp.eq.f32.partialorder %v2132, 8.507059e+37
  %v2134 = vand.u32 %v1925, 2147483648
  %v2135 = vor.u32 1.1754944e-38, %v2134
  %v2136 = vsel %vm2133, %v2135, %v2131
  %v2137 = vmul.f32 1.0, %v2136
  %v2138 = vrcp.pop %v1926
  %v2139 = vmul.f32 %v1926, %v2138
  %v2140 = vsub.f32 1.0, %v2139
  %v2141 = vmul.f32 %v2138, %v2140
  %v2142 = vadd.f32 %v2138, %v2141
  %vm2143 = vweird.f32 %v1926
  %vm2144 = vweird.f32 %v2138
  %vm2145 = vmor %vm2143, %vm2144
  %v2146 = vsel %vm2145, %v2138, %v2142
  %v2147 = vand.u32 2147483647, %v1926
  %vm2148 = vcmp.eq.f32.partialorder %v2147, 8.507059e+37
  %v2149 = vand.u32 %v1926, 2147483648
  %v2150 = vor.u32 1.1754944e-38, %v2149
  %v2151 = vsel %vm2148, %v2150, %v2146
  %v2152 = vmul.f32 1.0, %v2151
  %v2153 = vrcp.pop %v1927
  %v2154 = vmul.f32 %v1927, %v2153
  %v2155 = vsub.f32 1.0, %v2154
  %v2156 = vmul.f32 %v2153, %v2155
  %v2157 = vadd.f32 %v2153, %v2156
  %vm2158 = vweird.f32 %v1927
  %vm2159 = vweird.f32 %v2153
  %vm2160 = vmor %vm2158, %vm2159
  %v2161 = vsel %vm2160, %v2153, %v2157
  %v2162 = vand.u32 2147483647, %v1927
  %vm2163 = vcmp.eq.f32.partialorder %v2162, 8.507059e+37
  %v2164 = vand.u32 %v1927, 2147483648
  %v2165 = vor.u32 1.1754944e-38, %v2164
  %v2166 = vsel %vm2163, %v2165, %v2161
  %v2167 = vmul.f32 1.0, %v2166
  %v2168 = vmul.f32 %v1942, %v1448
  %v2169 = vmul.f32 %v1957, %v1449
  %v2170 = vmul.f32 %v1972, %v1450
  %v2171 = vmul.f32 %v1987, %v1451
  %v2172 = vmul.f32 %v2002, %v1452
  %v2173 = vmul.f32 %v2017, %v1453
  %v2174 = vmul.f32 %v2032, %v1454
  %v2175 = vmul.f32 %v2047, %v1455
  %v2176 = vmul.f32 %v2062, %v1456
  %v2177 = vmul.f32 %v2077, %v1457
  %v2178 = vmul.f32 %v2092, %v1458
  %v2179 = vmul.f32 %v2107, %v1459
  %v2180 = vmul.f32 %v2122, %v1460
  %v2181 = vmul.f32 %v2137, %v1461
  %v2182 = vmul.f32 %v2152, %v1462
  %v2183 = vmul.f32 %v2167, %v1463
  %v2184 = vtanh.pop %v988
  %v2185 = vtanh.pop %v1135
  %v2186 = vtanh.pop %v1282
  %v2187 = vtanh.pop %v1429
  %v2188 = vtanh.pop %v990
  %v2189 = vtanh.pop %v1137
  %v2190 = vtanh.pop %v1284
  %v2191 = vtanh.pop %v1431
  %v2192 = vtanh.pop %v993
  %v2193 = vtanh.pop %v1140
  %v2194 = vtanh.pop %v1287
  %v2195 = vtanh.pop %v1434
  %v2196 = vtanh.pop %v995
  %v2197 = vtanh.pop %v1142
  %v2198 = vtanh.pop %v1289
  %v2199 = vtanh.pop %v1436
  %v2200 = vmul.f32 %v1590, %v2184
  %v2201 = vmul.f32 %v1605, %v2185
  %v2202 = vmul.f32 %v1620, %v2186
  %v2203 = vmul.f32 %v1635, %v2187
  %v2204 = vmul.f32 %v1650, %v2188
  %v2205 = vmul.f32 %v1665, %v2189
  %v2206 = vmul.f32 %v1680, %v2190
  %v2207 = vmul.f32 %v1695, %v2191
  %v2208 = vmul.f32 %v1710, %v2192
  %v2209 = vmul.f32 %v1725, %v2193
  %v2210 = vmul.f32 %v1740, %v2194
  %v2211 = vmul.f32 %v1755, %v2195
  %v2212 = vmul.f32 %v1770, %v2196
  %v2213 = vmul.f32 %v1785, %v2197
  %v2214 = vmul.f32 %v1800, %v2198
  %v2215 = vmul.f32 %v1815, %v2199
  %v2216 = vadd.f32 %v2168, %v2200
  %v2217 = vadd.f32 %v2169, %v2201
  %v2218 = vadd.f32 %v2170, %v2202
  %v2219 = vadd.f32 %v2171, %v2203
  %v2220 = vadd.f32 %v2172, %v2204
  %v2221 = vadd.f32 %v2173, %v2205
  %v2222 = vadd.f32 %v2174, %v2206
  %v2223 = vadd.f32 %v2175, %v2207
  %v2224 = vadd.f32 %v2176, %v2208
  %v2225 = vadd.f32 %v2177, %v2209
  %v2226 = vadd.f32 %v2178, %v2210
  %v2227 = vadd.f32 %v2179, %v2211
  %v2228 = vadd.f32 %v2180, %v2212
  %v2229 = vadd.f32 %v2181, %v2213
  %v2230 = vadd.f32 %v2182, %v2214
  %v2231 = vadd.f32 %v2183, %v2215
  %v2232 = vld [vmem:[%s6] sm:$0xff]
  %v2233 = vld [vmem:[%s6 + $0x8] sm:$0xff]
  %v2234 = vld [vmem:[%s6 + $0x10] sm:$0xff]
  %v2235 = vld [vmem:[%s6 + $0x18] sm:$0xff]
  %v2236 = vld [vmem:[%s6 + $0x20] sm:$0xff]
  %v2237 = vld [vmem:[%s6 + $0x28] sm:$0xff]
  %v2238 = vld [vmem:[%s6 + $0x30] sm:$0xff]
  %v2239 = vld [vmem:[%s6 + $0x38] sm:$0xff]
  %v2240 = vld [vmem:[%s6 + $0x40] sm:$0xff]
  %v2241 = vld [vmem:[%s6 + $0x48] sm:$0xff]
  %v2242 = vld [vmem:[%s6 + $0x50] sm:$0xff]
  %v2243 = vld [vmem:[%s6 + $0x58] sm:$0xff]
  %v2244 = vld [vmem:[%s6 + $0x60] sm:$0xff]
  %v2245 = vld [vmem:[%s6 + $0x68] sm:$0xff]
  %v2246 = vld [vmem:[%s6 + $0x70] sm:$0xff]
  %v2247 = vld [vmem:[%s6 + $0x78] sm:$0xff]
  %v2248 = vmul.f32 %v2216, %v2232
  %v2249 = vmul.f32 %v2217, %v2233
  %v2250 = vmul.f32 %v2218, %v2234
  %v2251 = vmul.f32 %v2219, %v2235
  %v2252 = vmul.f32 %v2220, %v2236
  %v2253 = vmul.f32 %v2221, %v2237
  %v2254 = vmul.f32 %v2222, %v2238
  %v2255 = vmul.f32 %v2223, %v2239
  %v2256 = vmul.f32 %v2224, %v2240
  %v2257 = vmul.f32 %v2225, %v2241
  %v2258 = vmul.f32 %v2226, %v2242
  %v2259 = vmul.f32 %v2227, %v2243
  %v2260 = vmul.f32 %v2228, %v2244
  %v2261 = vmul.f32 %v2229, %v2245
  %v2262 = vmul.f32 %v2230, %v2246
  %v2263 = vmul.f32 %v2231, %v2247
  %v2264 = vadd.f32 %v998, %v2248
  %v2265 = vadd.f32 %v1145, %v2249
  %v2266 = vadd.f32 %v1292, %v2250
  %v2267 = vadd.f32 %v1439, %v2251
  %v2268 = vadd.f32 %v1000, %v2252
  %v2269 = vadd.f32 %v1147, %v2253
  %v2270 = vadd.f32 %v1294, %v2254
  %v2271 = vadd.f32 %v1441, %v2255
  %v2272 = vadd.f32 %v1003, %v2256
  %v2273 = vadd.f32 %v1150, %v2257
  %v2274 = vadd.f32 %v1297, %v2258
  %v2275 = vadd.f32 %v1444, %v2259
  %v2276 = vadd.f32 %v1005, %v2260
  %v2277 = vadd.f32 %v1152, %v2261
  %v2278 = vadd.f32 %v1299, %v2262
  %v2279 = vadd.f32 %v1446, %v2263
  %v2280 = vxor.u32 %v2264, 2147483648
  %v2281 = vxor.u32 %v2265, 2147483648
  %v2282 = vxor.u32 %v2266, 2147483648
  %v2283 = vxor.u32 %v2267, 2147483648
  %v2284 = vxor.u32 %v2268, 2147483648
  %v2285 = vxor.u32 %v2269, 2147483648
  %v2286 = vxor.u32 %v2270, 2147483648
  %v2287 = vxor.u32 %v2271, 2147483648
  %v2288 = vxor.u32 %v2272, 2147483648
  %v2289 = vxor.u32 %v2273, 2147483648
  %v2290 = vxor.u32 %v2274, 2147483648
  %v2291 = vxor.u32 %v2275, 2147483648
  %v2292 = vxor.u32 %v2276, 2147483648
  %v2293 = vxor.u32 %v2277, 2147483648
  %v2294 = vxor.u32 %v2278, 2147483648
  %v2295 = vxor.u32 %v2279, 2147483648
  %v2296 = vmul.f32 %v2280, 1.442695
  %v2297 = vpow.pop %v2296
  %v2298 = vmul.f32 %v2281, 1.442695
  %v2299 = vpow.pop %v2298
  %v2300 = vmul.f32 %v2282, 1.442695
  %v2301 = vpow.pop %v2300
  %v2302 = vmul.f32 %v2283, 1.442695
  %v2303 = vpow.pop %v2302
  %v2304 = vmul.f32 %v2284, 1.442695
  %v2305 = vpow.pop %v2304
  %v2306 = vmul.f32 %v2285, 1.442695
  %v2307 = vpow.pop %v2306
  %v2308 = vmul.f32 %v2286, 1.442695
  %v2309 = vpow.pop %v2308
  %v2310 = vmul.f32 %v2287, 1.442695
  %v2311 = vpow.pop %v2310
  %v2312 = vmul.f32 %v2288, 1.442695
  %v2313 = vpow.pop %v2312
  %v2314 = vmul.f32 %v2289, 1.442695
  %v2315 = vpow.pop %v2314
  %v2316 = vmul.f32 %v2290, 1.442695
  %v2317 = vpow.pop %v2316
  %v2318 = vmul.f32 %v2291, 1.442695
  %v2319 = vpow.pop %v2318
  %v2320 = vmul.f32 %v2292, 1.442695
  %v2321 = vpow.pop %v2320
  %v2322 = vmul.f32 %v2293, 1.442695
  %v2323 = vpow.pop %v2322
  %v2324 = vmul.f32 %v2294, 1.442695
  %v2325 = vpow.pop %v2324
  %v2326 = vmul.f32 %v2295, 1.442695
  %v2327 = vpow.pop %v2326
  %v2328 = vadd.f32 %v2297, 1.0
  %v2329 = vadd.f32 %v2299, 1.0
  %v2330 = vadd.f32 %v2301, 1.0
  %v2331 = vadd.f32 %v2303, 1.0
  %v2332 = vadd.f32 %v2305, 1.0
  %v2333 = vadd.f32 %v2307, 1.0
  %v2334 = vadd.f32 %v2309, 1.0
  %v2335 = vadd.f32 %v2311, 1.0
  %v2336 = vadd.f32 %v2313, 1.0
  %v2337 = vadd.f32 %v2315, 1.0
  %v2338 = vadd.f32 %v2317, 1.0
  %v2339 = vadd.f32 %v2319, 1.0
  %v2340 = vadd.f32 %v2321, 1.0
  %v2341 = vadd.f32 %v2323, 1.0
  %v2342 = vadd.f32 %v2325, 1.0
  %v2343 = vadd.f32 %v2327, 1.0
  %v2344 = vrcp.pop %v2328
  %v2345 = vmul.f32 %v2328, %v2344
  %v2346 = vsub.f32 1.0, %v2345
  %v2347 = vmul.f32 %v2344, %v2346
  %v2348 = vadd.f32 %v2344, %v2347
  %vm2349 = vweird.f32 %v2328
  %vm2350 = vweird.f32 %v2344
  %vm2351 = vmor %vm2349, %vm2350
  %v2352 = vsel %vm2351, %v2344, %v2348
  %v2353 = vand.u32 2147483647, %v2328
  %vm2354 = vcmp.eq.f32.partialorder %v2353, 8.507059e+37
  %v2355 = vand.u32 %v2328, 2147483648
  %v2356 = vor.u32 1.1754944e-38, %v2355
  %v2357 = vsel %vm2354, %v2356, %v2352
  %v2358 = vmul.f32 1.0, %v2357
  %v2359 = vrcp.pop %v2329
  %v2360 = vmul.f32 %v2329, %v2359
  %v2361 = vsub.f32 1.0, %v2360
  %v2362 = vmul.f32 %v2359, %v2361
  %v2363 = vadd.f32 %v2359, %v2362
  %vm2364 = vweird.f32 %v2329
  %vm2365 = vweird.f32 %v2359
  %vm2366 = vmor %vm2364, %vm2365
  %v2367 = vsel %vm2366, %v2359, %v2363
  %v2368 = vand.u32 2147483647, %v2329
  %vm2369 = vcmp.eq.f32.partialorder %v2368, 8.507059e+37
  %v2370 = vand.u32 %v2329, 2147483648
  %v2371 = vor.u32 1.1754944e-38, %v2370
  %v2372 = vsel %vm2369, %v2371, %v2367
  %v2373 = vmul.f32 1.0, %v2372
  %v2374 = vrcp.pop %v2330
  %v2375 = vmul.f32 %v2330, %v2374
  %v2376 = vsub.f32 1.0, %v2375
  %v2377 = vmul.f32 %v2374, %v2376
  %v2378 = vadd.f32 %v2374, %v2377
  %vm2379 = vweird.f32 %v2330
  %vm2380 = vweird.f32 %v2374
  %vm2381 = vmor %vm2379, %vm2380
  %v2382 = vsel %vm2381, %v2374, %v2378
  %v2383 = vand.u32 2147483647, %v2330
  %vm2384 = vcmp.eq.f32.partialorder %v2383, 8.507059e+37
  %v2385 = vand.u32 %v2330, 2147483648
  %v2386 = vor.u32 1.1754944e-38, %v2385
  %v2387 = vsel %vm2384, %v2386, %v2382
  %v2388 = vmul.f32 1.0, %v2387
  %v2389 = vrcp.pop %v2331
  %v2390 = vmul.f32 %v2331, %v2389
  %v2391 = vsub.f32 1.0, %v2390
  %v2392 = vmul.f32 %v2389, %v2391
  %v2393 = vadd.f32 %v2389, %v2392
  %vm2394 = vweird.f32 %v2331
  %vm2395 = vweird.f32 %v2389
  %vm2396 = vmor %vm2394, %vm2395
  %v2397 = vsel %vm2396, %v2389, %v2393
  %v2398 = vand.u32 2147483647, %v2331
  %vm2399 = vcmp.eq.f32.partialorder %v2398, 8.507059e+37
  %v2400 = vand.u32 %v2331, 2147483648
  %v2401 = vor.u32 1.1754944e-38, %v2400
  %v2402 = vsel %vm2399, %v2401, %v2397
  %v2403 = vmul.f32 1.0, %v2402
  %v2404 = vrcp.pop %v2332
  %v2405 = vmul.f32 %v2332, %v2404
  %v2406 = vsub.f32 1.0, %v2405
  %v2407 = vmul.f32 %v2404, %v2406
  %v2408 = vadd.f32 %v2404, %v2407
  %vm2409 = vweird.f32 %v2332
  %vm2410 = vweird.f32 %v2404
  %vm2411 = vmor %vm2409, %vm2410
  %v2412 = vsel %vm2411, %v2404, %v2408
  %v2413 = vand.u32 2147483647, %v2332
  %vm2414 = vcmp.eq.f32.partialorder %v2413, 8.507059e+37
  %v2415 = vand.u32 %v2332, 2147483648
  %v2416 = vor.u32 1.1754944e-38, %v2415
  %v2417 = vsel %vm2414, %v2416, %v2412
  %v2418 = vmul.f32 1.0, %v2417
  %v2419 = vrcp.pop %v2333
  %v2420 = vmul.f32 %v2333, %v2419
  %v2421 = vsub.f32 1.0, %v2420
  %v2422 = vmul.f32 %v2419, %v2421
  %v2423 = vadd.f32 %v2419, %v2422
  %vm2424 = vweird.f32 %v2333
  %vm2425 = vweird.f32 %v2419
  %vm2426 = vmor %vm2424, %vm2425
  %v2427 = vsel %vm2426, %v2419, %v2423
  %v2428 = vand.u32 2147483647, %v2333
  %vm2429 = vcmp.eq.f32.partialorder %v2428, 8.507059e+37
  %v2430 = vand.u32 %v2333, 2147483648
  %v2431 = vor.u32 1.1754944e-38, %v2430
  %v2432 = vsel %vm2429, %v2431, %v2427
  %v2433 = vmul.f32 1.0, %v2432
  %v2434 = vrcp.pop %v2334
  %v2435 = vmul.f32 %v2334, %v2434
  %v2436 = vsub.f32 1.0, %v2435
  %v2437 = vmul.f32 %v2434, %v2436
  %v2438 = vadd.f32 %v2434, %v2437
  %vm2439 = vweird.f32 %v2334
  %vm2440 = vweird.f32 %v2434
  %vm2441 = vmor %vm2439, %vm2440
  %v2442 = vsel %vm2441, %v2434, %v2438
  %v2443 = vand.u32 2147483647, %v2334
  %vm2444 = vcmp.eq.f32.partialorder %v2443, 8.507059e+37
  %v2445 = vand.u32 %v2334, 2147483648
  %v2446 = vor.u32 1.1754944e-38, %v2445
  %v2447 = vsel %vm2444, %v2446, %v2442
  %v2448 = vmul.f32 1.0, %v2447
  %v2449 = vrcp.pop %v2335
  %v2450 = vmul.f32 %v2335, %v2449
  %v2451 = vsub.f32 1.0, %v2450
  %v2452 = vmul.f32 %v2449, %v2451
  %v2453 = vadd.f32 %v2449, %v2452
  %vm2454 = vweird.f32 %v2335
  %vm2455 = vweird.f32 %v2449
  %vm2456 = vmor %vm2454, %vm2455
  %v2457 = vsel %vm2456, %v2449, %v2453
  %v2458 = vand.u32 2147483647, %v2335
  %vm2459 = vcmp.eq.f32.partialorder %v2458, 8.507059e+37
  %v2460 = vand.u32 %v2335, 2147483648
  %v2461 = vor.u32 1.1754944e-38, %v2460
  %v2462 = vsel %vm2459, %v2461, %v2457
  %v2463 = vmul.f32 1.0, %v2462
  %v2464 = vrcp.pop %v2336
  %v2465 = vmul.f32 %v2336, %v2464
  %v2466 = vsub.f32 1.0, %v2465
  %v2467 = vmul.f32 %v2464, %v2466
  %v2468 = vadd.f32 %v2464, %v2467
  %vm2469 = vweird.f32 %v2336
  %vm2470 = vweird.f32 %v2464
  %vm2471 = vmor %vm2469, %vm2470
  %v2472 = vsel %vm2471, %v2464, %v2468
  %v2473 = vand.u32 2147483647, %v2336
  %vm2474 = vcmp.eq.f32.partialorder %v2473, 8.507059e+37
  %v2475 = vand.u32 %v2336, 2147483648
  %v2476 = vor.u32 1.1754944e-38, %v2475
  %v2477 = vsel %vm2474, %v2476, %v2472
  %v2478 = vmul.f32 1.0, %v2477
  %v2479 = vrcp.pop %v2337
  %v2480 = vmul.f32 %v2337, %v2479
  %v2481 = vsub.f32 1.0, %v2480
  %v2482 = vmul.f32 %v2479, %v2481
  %v2483 = vadd.f32 %v2479, %v2482
  %vm2484 = vweird.f32 %v2337
  %vm2485 = vweird.f32 %v2479
  %vm2486 = vmor %vm2484, %vm2485
  %v2487 = vsel %vm2486, %v2479, %v2483
  %v2488 = vand.u32 2147483647, %v2337
  %vm2489 = vcmp.eq.f32.partialorder %v2488, 8.507059e+37
  %v2490 = vand.u32 %v2337, 2147483648
  %v2491 = vor.u32 1.1754944e-38, %v2490
  %v2492 = vsel %vm2489, %v2491, %v2487
  %v2493 = vmul.f32 1.0, %v2492
  %v2494 = vrcp.pop %v2338
  %v2495 = vmul.f32 %v2338, %v2494
  %v2496 = vsub.f32 1.0, %v2495
  %v2497 = vmul.f32 %v2494, %v2496
  %v2498 = vadd.f32 %v2494, %v2497
  %vm2499 = vweird.f32 %v2338
  %vm2500 = vweird.f32 %v2494
  %vm2501 = vmor %vm2499, %vm2500
  %v2502 = vsel %vm2501, %v2494, %v2498
  %v2503 = vand.u32 2147483647, %v2338
  %vm2504 = vcmp.eq.f32.partialorder %v2503, 8.507059e+37
  %v2505 = vand.u32 %v2338, 2147483648
  %v2506 = vor.u32 1.1754944e-38, %v2505
  %v2507 = vsel %vm2504, %v2506, %v2502
  %v2508 = vmul.f32 1.0, %v2507
  %v2509 = vrcp.pop %v2339
  %v2510 = vmul.f32 %v2339, %v2509
  %v2511 = vsub.f32 1.0, %v2510
  %v2512 = vmul.f32 %v2509, %v2511
  %v2513 = vadd.f32 %v2509, %v2512
  %vm2514 = vweird.f32 %v2339
  %vm2515 = vweird.f32 %v2509
  %vm2516 = vmor %vm2514, %vm2515
  %v2517 = vsel %vm2516, %v2509, %v2513
  %v2518 = vand.u32 2147483647, %v2339
  %vm2519 = vcmp.eq.f32.partialorder %v2518, 8.507059e+37
  %v2520 = vand.u32 %v2339, 2147483648
  %v2521 = vor.u32 1.1754944e-38, %v2520
  %v2522 = vsel %vm2519, %v2521, %v2517
  %v2523 = vmul.f32 1.0, %v2522
  %v2524 = vrcp.pop %v2340
  %v2525 = vmul.f32 %v2340, %v2524
  %v2526 = vsub.f32 1.0, %v2525
  %v2527 = vmul.f32 %v2524, %v2526
  %v2528 = vadd.f32 %v2524, %v2527
  %vm2529 = vweird.f32 %v2340
  %vm2530 = vweird.f32 %v2524
  %vm2531 = vmor %vm2529, %vm2530
  %v2532 = vsel %vm2531, %v2524, %v2528
  %v2533 = vand.u32 2147483647, %v2340
  %vm2534 = vcmp.eq.f32.partialorder %v2533, 8.507059e+37
  %v2535 = vand.u32 %v2340, 2147483648
  %v2536 = vor.u32 1.1754944e-38, %v2535
  %v2537 = vsel %vm2534, %v2536, %v2532
  %v2538 = vmul.f32 1.0, %v2537
  %v2539 = vrcp.pop %v2341
  %v2540 = vmul.f32 %v2341, %v2539
  %v2541 = vsub.f32 1.0, %v2540
  %v2542 = vmul.f32 %v2539, %v2541
  %v2543 = vadd.f32 %v2539, %v2542
  %vm2544 = vweird.f32 %v2341
  %vm2545 = vweird.f32 %v2539
  %vm2546 = vmor %vm2544, %vm2545
  %v2547 = vsel %vm2546, %v2539, %v2543
  %v2548 = vand.u32 2147483647, %v2341
  %vm2549 = vcmp.eq.f32.partialorder %v2548, 8.507059e+37
  %v2550 = vand.u32 %v2341, 2147483648
  %v2551 = vor.u32 1.1754944e-38, %v2550
  %v2552 = vsel %vm2549, %v2551, %v2547
  %v2553 = vmul.f32 1.0, %v2552
  %v2554 = vrcp.pop %v2342
  %v2555 = vmul.f32 %v2342, %v2554
  %v2556 = vsub.f32 1.0, %v2555
  %v2557 = vmul.f32 %v2554, %v2556
  %v2558 = vadd.f32 %v2554, %v2557
  %vm2559 = vweird.f32 %v2342
  %vm2560 = vweird.f32 %v2554
  %vm2561 = vmor %vm2559, %vm2560
  %v2562 = vsel %vm2561, %v2554, %v2558
  %v2563 = vand.u32 2147483647, %v2342
  %vm2564 = vcmp.eq.f32.partialorder %v2563, 8.507059e+37
  %v2565 = vand.u32 %v2342, 2147483648
  %v2566 = vor.u32 1.1754944e-38, %v2565
  %v2567 = vsel %vm2564, %v2566, %v2562
  %v2568 = vmul.f32 1.0, %v2567
  %v2569 = vrcp.pop %v2343
  %v2570 = vmul.f32 %v2343, %v2569
  %v2571 = vsub.f32 1.0, %v2570
  %v2572 = vmul.f32 %v2569, %v2571
  %v2573 = vadd.f32 %v2569, %v2572
  %vm2574 = vweird.f32 %v2343
  %vm2575 = vweird.f32 %v2569
  %vm2576 = vmor %vm2574, %vm2575
  %v2577 = vsel %vm2576, %v2569, %v2573
  %v2578 = vand.u32 2147483647, %v2343
  %vm2579 = vcmp.eq.f32.partialorder %v2578, 8.507059e+37
  %v2580 = vand.u32 %v2343, 2147483648
  %v2581 = vor.u32 1.1754944e-38, %v2580
  %v2582 = vsel %vm2579, %v2581, %v2577
  %v2583 = vmul.f32 1.0, %v2582
  %v2584 = vtanh.pop %v2216
  %v2585 = vtanh.pop %v2217
  %v2586 = vtanh.pop %v2218
  %v2587 = vtanh.pop %v2219
  %v2588 = vtanh.pop %v2220
  %v2589 = vtanh.pop %v2221
  %v2590 = vtanh.pop %v2222
  %v2591 = vtanh.pop %v2223
  %v2592 = vtanh.pop %v2224
  %v2593 = vtanh.pop %v2225
  %v2594 = vtanh.pop %v2226
  %v2595 = vtanh.pop %v2227
  %v2596 = vtanh.pop %v2228
  %v2597 = vtanh.pop %v2229
  %v2598 = vtanh.pop %v2230
  %v2599 = vtanh.pop %v2231
  %v2600 = vmul.f32 %v2358, %v2584
  %v2601 = vmul.f32 %v2373, %v2585
  %v2602 = vmul.f32 %v2388, %v2586
  %v2603 = vmul.f32 %v2403, %v2587
  %v2604 = vmul.f32 %v2418, %v2588
  %v2605 = vmul.f32 %v2433, %v2589
  %v2606 = vmul.f32 %v2448, %v2590
  %v2607 = vmul.f32 %v2463, %v2591
  %v2608 = vmul.f32 %v2478, %v2592
  %v2609 = vmul.f32 %v2493, %v2593
  %v2610 = vmul.f32 %v2508, %v2594
  %v2611 = vmul.f32 %v2523, %v2595
  %v2612 = vmul.f32 %v2538, %v2596
  %v2613 = vmul.f32 %v2553, %v2597
  %v2614 = vmul.f32 %v2568, %v2598
  %v2615 = vmul.f32 %v2583, %v2599
  %2616 = vst [vmem:[%s7] sm:$0xff] %v2600
  %2617 = vst [vmem:[%s7 + $0x8] sm:$0xff] %v2601
  %2618 = vst [vmem:[%s7 + $0x10] sm:$0xff] %v2602
  %2619 = vst [vmem:[%s7 + $0x18] sm:$0xff] %v2603
  %2620 = vst [vmem:[%s7 + $0x20] sm:$0xff] %v2604
  %2621 = vst [vmem:[%s7 + $0x28] sm:$0xff] %v2605
  %2622 = vst [vmem:[%s7 + $0x30] sm:$0xff] %v2606
  %2623 = vst [vmem:[%s7 + $0x38] sm:$0xff] %v2607
  %2624 = vst [vmem:[%s7 + $0x40] sm:$0xff] %v2608
  %2625 = vst [vmem:[%s7 + $0x48] sm:$0xff] %v2609
  %2626 = vst [vmem:[%s7 + $0x50] sm:$0xff] %v2610
  %2627 = vst [vmem:[%s7 + $0x58] sm:$0xff] %v2611
  %2628 = vst [vmem:[%s7 + $0x60] sm:$0xff] %v2612
  %2629 = vst [vmem:[%s7 + $0x68] sm:$0xff] %v2613
  %2630 = vst [vmem:[%s7 + $0x70] sm:$0xff] %v2614
  %2631 = vst [vmem:[%s7 + $0x78] sm:$0xff] %v2615
  %2632 = vst [vmem:[%s8] sm:$0xff] %v2216
  %2633 = vst [vmem:[%s8 + $0x8] sm:$0xff] %v2217
  %2634 = vst [vmem:[%s8 + $0x10] sm:$0xff] %v2218
  %2635 = vst [vmem:[%s8 + $0x18] sm:$0xff] %v2219
  %2636 = vst [vmem:[%s8 + $0x20] sm:$0xff] %v2220
  %2637 = vst [vmem:[%s8 + $0x28] sm:$0xff] %v2221
  %2638 = vst [vmem:[%s8 + $0x30] sm:$0xff] %v2222
  %2639 = vst [vmem:[%s8 + $0x38] sm:$0xff] %v2223
  %2640 = vst [vmem:[%s8 + $0x40] sm:$0xff] %v2224
  %2641 = vst [vmem:[%s8 + $0x48] sm:$0xff] %v2225
  %2642 = vst [vmem:[%s8 + $0x50] sm:$0xff] %v2226
  %2643 = vst [vmem:[%s8 + $0x58] sm:$0xff] %v2227
  %2644 = vst [vmem:[%s8 + $0x60] sm:$0xff] %v2228
  %2645 = vst [vmem:[%s8 + $0x68] sm:$0xff] %v2229
  %2646 = vst [vmem:[%s8 + $0x70] sm:$0xff] %v2230
  %2647 = vst [vmem:[%s8 + $0x78] sm:$0xff] %v2231
  // Predicated region
  $region30: #{_lambda_.1} parent=0 // pred_check
    _
  $region31: #{_lambda_.1} parent=0 // pred_check_branch
    %2649 = sbr.rel (0) target = $region33
  $region32: #{_lambda_.1} parent=0 // pred_region
    _
  $region33: #{_lambda_.1} parent=0 // pred_fallthru
    _
  // Predicated region
  $region34: #{_lambda_.1} parent=0 // pred_check
    _
  $region35: #{_lambda_.1} parent=0 // pred_check_branch
    %2651 = sbr.rel (0) target = $region37
  $region36: #{_lambda_.1} parent=0 // pred_region
    _
  $region37: #{_lambda_.1} parent=0 // pred_fallthru
    _
  // Predicated region
  $region38: #{_lambda_.1} parent=0 // pred_check
    _
  $region39: #{_lambda_.1} parent=0 // pred_check_branch
    %2653 = sbr.rel (0) target = $region41
  $region40: #{_lambda_.1} parent=0 // pred_region
    _
  $region41: #{_lambda_.1} parent=0 // pred_fallthru
    _
  // Predicated region
  $region42: #{_lambda_.1} parent=0 // pred_check
    _
  $region43: #{_lambda_.1} parent=0 // pred_check_branch
    %2655 = sbr.rel (0) target = $region45
  $region44: #{_lambda_.1} parent=0 // pred_region
    _
  $region45: #{_lambda_.1} parent=0 // pred_fallthru
    _

</llo_original>
